<compile_context>
chip_gen: v7x
topology: tpu7x:2x2x1
jax: 0.10.0
libtpu: 0.0.40
codegen_flags: <defaults>
</compile_context>

<pallas_src>
import jax
import jax.numpy as jnp
from jax.experimental import pallas as pl
from jax.experimental.pallas import tpu as pltpu


# ---------------------------------------------------------------------------
# Kernel 1: per-edge messages  m = h_src * theta_edge(edge_code + src + dst)
# ---------------------------------------------------------------------------
def _edge_message_kernel(e_ref, hs_ref, hd_ref,
                         w1_ref, b1_ref, w2_ref, ws_ref, wd_ref, b_code_ref,
                         wt1_ref, bt1_ref, wt2_ref, bt2_ref,
                         m_ref):
    f32 = jnp.float32
    hs = hs_ref[...]

    # edge_affine first layer: Linear -> ReLU
    ec = jnp.maximum(
        jnp.dot(e_ref[...], w1_ref[...], preferred_element_type=f32) + b1_ref[...],
        0.0)

    # edge_code + src_code + dst_code as partial-sum matmuls (no in-kernel concat).
    s = jnp.maximum(
        jnp.dot(ec, w2_ref[...], preferred_element_type=f32)
        + jnp.dot(hs, ws_ref[...], preferred_element_type=f32)
        + jnp.dot(hd_ref[...], wd_ref[...], preferred_element_type=f32)
        + b_code_ref[...],
        0.0)

    # theta_edge: (ReLU already applied above) -> Linear -> ReLU -> Linear
    t = jnp.maximum(
        jnp.dot(s, wt1_ref[...], preferred_element_type=f32) + bt1_ref[...],
        0.0)
    e_emb = jnp.dot(t, wt2_ref[...], preferred_element_type=f32) + bt2_ref[...]

    # fn.u_mul_e -- stored in bf16 to halve the messages HBM round trip.
    m_ref[...] = (hs * e_emb).astype(m_ref.dtype)


# ---------------------------------------------------------------------------
# Kernel 2: dst-bucketed segment-sum (work-list grid) + fused phi
# ---------------------------------------------------------------------------
def _aggregate_phi_kernel(wnode_ref, wedge_ref, wfirst_ref, wlast_ref,   # prefetch
                          dst_ref, m_ref, h_ref,
                          wpd_ref, wpe_ref, bpi_ref, wphi_ref, bphi_ref,
                          out_ref, acc_ref):
    f32 = jnp.float32
    w = pl.program_id(0)

    @pl.when(wfirst_ref[w] == 1)
    def _():
        acc_ref[...] = jnp.zeros_like(acc_ref)

    tn = acc_ref.shape[0]
    te = m_ref.shape[0]
    # One-hot scatter mask for this (node-tile, edge-tile) work item, built in
    # registers (never touches HBM) and cast to bf16 -> native MXU rate.
    # Padded edges carry dst = n_pad and padded node rows have ids < n_pad but
    # no matching edges, so they never contribute.
    row_ids = (wnode_ref[w] * tn
               + jax.lax.broadcasted_iota(jnp.int32, (tn, te), 0))
    mask = jnp.where(dst_ref[...] == row_ids, 1.0, 0.0).astype(jnp.bfloat16)
    acc_ref[...] += jnp.dot(mask, m_ref[...], preferred_element_type=f32)

    @pl.when(wlast_ref[w] == 1)
    def _():
        # phi: Linear(ReLU(phi_dst(h) + phi_edge(edge_emb))) -- partial sums,
        # no in-kernel concat.
        z = jnp.maximum(
            jnp.dot(h_ref[...], wpd_ref[...], preferred_element_type=f32)
            + jnp.dot(acc_ref[...], wpe_ref[...], preferred_element_type=f32)
            + bpi_ref[...],
            0.0)
        out_ref[...] = (jnp.dot(z, wphi_ref[...], preferred_element_type=f32)
                        + bphi_ref[...])


# ---------------------------------------------------------------------------
# Wrapper
# ---------------------------------------------------------------------------
def _round_up(x, m):
    return ((x + m - 1) // m) * m


def _pad_rows(x, rows):
    return jnp.pad(x, ((0, rows - x.shape[0]), (0, 0)))


def _vmem_limit_bytes():
    # v5e/v6e: 128 MiB physical VMEM, v7x: 64 MiB.  Use ~3/4 of it (headroom
    # for compiler scratch), capped; fall back to a v7x-safe value.
    try:
        cap = pltpu.get_tpu_info().vmem_capacity_bytes
        return int(min(cap * 3 // 4, 100 * 1024 * 1024))
    except Exception:
        return 48 * 1024 * 1024


def smooth_conv_layer(node_feat, edge_feat, src_idx, dst_idx, params,
                      *, tile_e=1024, tile_n=512):
    """Forward pass of SmoothConvLayerNew (inference).

    Sorting, gathers, padding and small weight fusions are wrapper glue; all
    matmuls, activations, u_mul_e and the segment-sum run inside the Pallas
    kernels."""
    N, Dn = node_feat.shape
    E, De = edge_feat.shape
    H = params["w1"].shape[1]
    Do = params["wphi"].shape[1]

    # ---- lane-dense padding of the feature dims ----
    Dn_pad = _round_up(Dn, 128)
    Do_pad = _round_up(Do, 128)

    # ---- tiling ----
    te = min(tile_e, _round_up(E, 128))      # edge tile (multiple of 128)
    e_pad = _round_up(E, te)
    tn = min(tile_n, _round_up(N, 16))       # node tile (multiple of 16)
    n_pad = _round_up(N, tn)
    n_e_tiles = e_pad // te
    n_n_tiles = n_pad // tn

    # ---- sort edges by destination: each node tile owns a contiguous edge
    #      range, so the aggregation kernel only visits the edge tiles that can
    #      actually hit it (O(E) scatter work / HBM traffic, not O(N*E)).
    dst_i32 = dst_idx.astype(jnp.int32)
    order = jnp.argsort(dst_i32)
    dst_s = dst_i32[order]                   # sorted dsts, length E
    src_s = src_idx.astype(jnp.int32)[order]

    # ---- gathers + padding (wrapper-side XLA ops) ----
    h_lane = jnp.pad(node_feat, ((0, 0), (0, Dn_pad - Dn)))        # [N, Dn_pad]
    h_src = _pad_rows(h_lane[src_s], e_pad)                        # [E_pad, Dn_pad]
    h_dst = _pad_rows(h_lane[dst_s], e_pad)                        # [E_pad, Dn_pad]
    e_p = _pad_rows(edge_feat[order], e_pad)                       # [E_pad, De]
    h_p = _pad_rows(h_lane, n_pad)                                 # [N_pad, Dn_pad]
    # Padded edges carry dst = n_pad, which never matches a node row id.
    dst_row = jnp.full((1, e_pad), n_pad, jnp.int32).at[0, :E].set(dst_s)

    # ---- fused / padded weights (built once, outside the grid loops) ----
    b_code = params["b2"] + params["bs"] + params["bd"]
    ws = jnp.pad(params["ws"], ((0, Dn_pad - Dn), (0, 0)))
    wd = jnp.pad(params["wd"], ((0, Dn_pad - Dn), (0, 0)))
    wt2 = jnp.pad(params["wt2"], ((0, 0), (0, Dn_pad - Dn)))
    bt2 = jnp.pad(params["bt2"], ((0, 0), (0, Dn_pad - Dn)))
    wpd = jnp.pad(params["wpd"], ((0, Dn_pad - Dn), (0, 0)))
    wpe = jnp.pad(params["wpe"], ((0, Dn_pad - Dn), (0, 0)))
    b_phi_in = params["bpd"] + params["bpe"]
    wphi = jnp.pad(params["wphi"], ((0, 0), (0, Do_pad - Do)))
    bphi = jnp.pad(params["bphi"], ((0, 0), (0, Do_pad - Do)))

    vmem_limit = _vmem_limit_bytes()

    # ------------------------- kernel 1: edge messages ----------------------
    full1 = lambda arr: pl.BlockSpec(arr.shape, lambda i: (0,) * arr.ndim)
    flops1 = 2 * e_pad * (De * H + 2 * H * H + 2 * Dn_pad * H + H * Dn_pad) + e_pad * Dn_pad
    bytes1 = (4 * e_pad * (De + 2 * Dn_pad) + 2 * e_pad * Dn_pad
              + 4 * (De * H + 2 * H * H + 2 * Dn_pad * H + H * Dn_pad + 4 * H + Dn_pad))
    messages = pl.pallas_call(
        _edge_message_kernel,
        out_shape=jax.ShapeDtypeStruct((e_pad, Dn_pad), jnp.bfloat16),
        grid_spec=pltpu.PrefetchScalarGridSpec(
            num_scalar_prefetch=0,
            grid=(n_e_tiles,),
            in_specs=[
                pl.BlockSpec((te, De), lambda i: (i, 0)),
                pl.BlockSpec((te, Dn_pad), lambda i: (i, 0)),
                pl.BlockSpec((te, Dn_pad), lambda i: (i, 0)),
                full1(params["w1"]), full1(params["b1"]), full1(params["w2"]),
                full1(ws), full1(wd), full1(b_code),
                full1(params["wt1"]), full1(params["bt1"]), full1(wt2), full1(bt2),
            ],
            out_specs=pl.BlockSpec((te, Dn_pad), lambda i: (i, 0)),
        ),
        compiler_params=pltpu.CompilerParams(
            # >= 2 edge tiles at realistic sizes -> megacore engages on v7x.
            dimension_semantics=("parallel",),
            vmem_limit_bytes=vmem_limit,
        ),
        cost_estimate=pl.CostEstimate(flops=int(flops1), transcendentals=0,
                                      bytes_accessed=int(bytes1)),
    )(e_p, h_src, h_dst,
      params["w1"], params["b1"], params["w2"], ws, wd, b_code,
      params["wt1"], params["bt1"], wt2, bt2)

    # ---- per-node-tile edge-tile ranges + flattened work list --------------
    node_lo = jnp.arange(n_n_tiles, dtype=jnp.int32) * tn
    lo = jnp.searchsorted(dst_s, node_lo, side="left").astype(jnp.int32)
    hi = jnp.searchsorted(dst_s, node_lo + tn, side="left").astype(jnp.int32)
    tile_lo_raw = lo // te
    tile_hi = (hi + te - 1) // te
    nonempty = hi > lo
    # Empty node tiles still get one (fully masked) work item so their phi
    # output is produced.
    count = jnp.where(nonempty, tile_hi - tile_lo_raw, 1).astype(jnp.int32)
    tile_lo = jnp.where(nonempty, tile_lo_raw, 0).astype(jnp.int32)

    csum = jnp.cumsum(count)
    start = csum - count
    # Static bound on the work-list length: contiguous per-node-tile edge
    # ranges can overlap at most n_e_tiles + n_n_tiles - 1 (node, edge) pairs.
    n_work = n_e_tiles + n_n_tiles - 1

    w_ids = jnp.arange(n_work, dtype=jnp.int32)
    work_node = jnp.minimum(jnp.searchsorted(csum, w_ids, side="right"),
                            n_n_tiles - 1).astype(jnp.int32)
    local = w_ids - start[work_node]
    valid = w_ids < csum[-1]
    # Padded work items repeat the last real edge tile (DMA skipped) and never
    # fire first/last, so they are harmless filler steps.
    last_edge = tile_lo[n_n_tiles - 1] + count[n_n_tiles - 1] - 1
    work_edge = jnp.clip(jnp.where(valid, tile_lo[work_node] + local, last_edge),
                         0, n_e_tiles - 1).astype(jnp.int32)
    w_first = (valid & (local == 0)).astype(jnp.int32)
    w_last = (valid & (local == count[work_node] - 1)).astype(jnp.int32)

    # --------------------- kernel 2: segment-sum + phi ----------------------
    full2 = lambda arr: pl.BlockSpec(arr.shape,
                                     lambda w, wn, we, wf, wl: (0,) * arr.ndim)
    flops2 = (2 * n_work * tn * te * Dn_pad
              + 2 * n_pad * (2 * Dn_pad * H + H * Do_pad))
    bytes2 = (2 * n_work * te * Dn_pad + 4 * n_work * te
              + 4 * n_pad * (Dn_pad + Do_pad)
              + 4 * (2 * Dn_pad * H + H * Do_pad + H + Do_pad))
    out_p = pl.pallas_call(
        _aggregate_phi_kernel,
        out_shape=jax.ShapeDtypeStruct((n_pad, Do_pad), jnp.float32),
        grid_spec=pltpu.PrefetchScalarGridSpec(
            num_scalar_prefetch=4,
            grid=(n_work,),
            in_specs=[
                pl.BlockSpec((1, te), lambda w, wn, we, wf, wl: (0, we[w])),
                pl.BlockSpec((te, Dn_pad), lambda w, wn, we, wf, wl: (we[w], 0)),
                pl.BlockSpec((tn, Dn_pad), lambda w, wn, we, wf, wl: (wn[w], 0)),
                full2(wpd), full2(wpe), full2(b_phi_in), full2(wphi), full2(bphi),
            ],
            out_specs=pl.BlockSpec((tn, Do_pad),
                                   lambda w, wn, we, wf, wl: (wn[w], 0)),
            scratch_shapes=[pltpu.VMEM((tn, Dn_pad), jnp.float32)],
        ),
        compiler_params=pltpu.CompilerParams(
            # Work items for one node tile must stay consecutive (resident
            # accumulator), so the flat work-list axis is "arbitrary".
            dimension_semantics=("arbitrary",),
            vmem_limit_bytes=vmem_limit,
        ),
        cost_estimate=pl.CostEstimate(flops=int(flops2), transcendentals=0,
                                      bytes_accessed=int(bytes2)),
    )(work_node, work_edge, w_first, w_last,
      dst_row, messages, h_p,
      wpd, wpe, b_phi_in, wphi, bphi)

    return out_p[:N, :Do]


# ---------------------------------------------------------------------------
# Pure-JAX reference & parameter construction
# ---------------------------------------------------------------------------
def reference(node_feat, edge_feat, src_idx, dst_idx, p):
    relu = lambda x: jnp.maximum(x, 0.0)
    ec = relu(edge_feat @ p["w1"] + p["b1"]) @ p["w2"] + p["b2"]
    sc = node_feat[src_idx] @ p["ws"] + p["bs"]
    dc = node_feat[dst_idx] @ p["wd"] + p["bd"]
    s = relu(ec + sc + dc)
    e_emb = relu(s @ p["wt1"] + p["bt1"]) @ p["wt2"] + p["bt2"]
    m = node_feat[src_idx] * e_emb
    edge_emb = jax.ops.segment_sum(m, dst_idx, num_segments=node_feat.shape[0])
    z = relu(node_feat @ p["wpd"] + p["bpd"] + edge_emb @ p["wpe"] + p["bpe"])
    return z @ p["wphi"] + p["bphi"]


def make_params(key, Dn, De, H, Do):
    names_shapes = [
        ("w1", (De, H)), ("b1", (1, H)), ("w2", (H, H)), ("b2", (1, H)),
        ("ws", (Dn, H)), ("bs", (1, H)), ("wd", (Dn, H)), ("bd", (1, H)),
        ("wt1", (H, H)), ("bt1", (1, H)), ("wt2", (H, Dn)), ("bt2", (1, Dn)),
        ("wpd", (Dn, H)), ("bpd", (1, H)), ("wpe", (Dn, H)), ("bpe", (1, H)),
        ("wphi", (H, Do)), ("bphi", (1, Do)),
    ]
    keys = jax.random.split(key, len(names_shapes))
    params = {}
    for (name, shape), k in zip(names_shapes, keys):
        fan_in = shape[0] if name.startswith("w") else shape[1]
        scale = 1.0 / jnp.sqrt(jnp.float32(fan_in))
        params[name] = (scale * jax.random.normal(k, shape, jnp.float32)).astype(jnp.float32)
    return params


def _check(out, ref, tag):
    err = float(jnp.max(jnp.abs(out - ref)))
    scale = float(jnp.max(jnp.abs(ref)))
    # bf16 messages on the scatter path loosen tolerance vs the f32 reference.
    assert err <= 5e-2 * max(scale, 1.0), f"{tag}: mismatch err={err}, scale={scale}"


if __name__ == "__main__":
    root = jax.random.PRNGKey(0)
    k_node, k_edge, k_src, k_dst, k_param, k_big = jax.random.split(root, 6)

    # Small synthetic graph (single tile along both axes).
    N, E, Dn, De, H, Do = 8, 16, 16, 8, 32, 16
    node_feat = jax.random.normal(k_node, (N, Dn), jnp.float32)
    edge_feat = jax.random.normal(k_edge, (E, De), jnp.float32)
    src_idx = jax.random.randint(k_src, (E,), 0, N)
    dst_idx = jax.random.randint(k_dst, (E,), 0, N)
    params = make_params(k_param, Dn, De, H, Do)

    conv = jax.jit(smooth_conv_layer, static_argnames=("tile_e", "tile_n"))
    out = jax.block_until_ready(conv(node_feat, edge_feat, src_idx, dst_idx, params))
    assert out.shape == (N, Do)
    _check(out, reference(node_feat, edge_feat, src_idx, dst_idx, params), "small")

    # Slightly larger graph with small tiles: exercises the dst-bucketed
    # multi-tile work list (boundary-spanning edge tiles, padding, empties).
    kk = jax.random.split(k_big, 4)
    N2, E2 = 50, 300
    node2 = jax.random.normal(kk[0], (N2, Dn), jnp.float32)
    edge2 = jax.random.normal(kk[1], (E2, De), jnp.float32)
    src2 = jax.random.randint(kk[2], (E2,), 0, N2)
    dst2 = jax.random.randint(kk[3], (E2,), 0, N2)
    out2 = jax.block_until_ready(
        conv(node2, edge2, src2, dst2, params, tile_e=128, tile_n=16))
    assert out2.shape == (N2, Do)
    _check(out2, reference(node2, edge2, src2, dst2, params), "multi-tile")

    print("KERNEL_OK")
</pallas_src>

<mosaic_0001>
module attributes {stable_mosaic.version = 11 : i64} {
  func.func @_edge_message_kernel(%arg0: i32, %arg1: memref<128x8xf32, #tpu.memory_space<vmem>>, %arg2: memref<128x128xf32, #tpu.memory_space<vmem>>, %arg3: memref<128x128xf32, #tpu.memory_space<vmem>>, %arg4: memref<8x32xf32, #tpu.memory_space<vmem>>, %arg5: memref<1x32xf32, #tpu.memory_space<vmem>>, %arg6: memref<32x32xf32, #tpu.memory_space<vmem>>, %arg7: memref<128x32xf32, #tpu.memory_space<vmem>>, %arg8: memref<128x32xf32, #tpu.memory_space<vmem>>, %arg9: memref<1x32xf32, #tpu.memory_space<vmem>>, %arg10: memref<32x32xf32, #tpu.memory_space<vmem>>, %arg11: memref<1x32xf32, #tpu.memory_space<vmem>>, %arg12: memref<32x128xf32, #tpu.memory_space<vmem>>, %arg13: memref<1x128xf32, #tpu.memory_space<vmem>>, %arg14: memref<128x128xbf16, #tpu.memory_space<vmem>>) attributes {dimension_semantics = [#tpu.dimension_semantics<parallel>], iteration_bounds = array<i64: 1>, scalar_prefetch = 0 : i64, scratch_operands = 0 : i64, tpu.core_type = #tpu.core_type<tc>, window_params = [{transform_indices = @transform_0, window_bounds = array<i64: 128, 8>}, {transform_indices = @transform_1, window_bounds = array<i64: 128, 128>}, {transform_indices = @transform_2, window_bounds = array<i64: 128, 128>}, {pipeline_mode = #tpu.pipeline_mode<synchronous>, transform_indices = @transform_3, window_bounds = array<i64: 8, 32>}, {pipeline_mode = #tpu.pipeline_mode<synchronous>, transform_indices = @transform_4, window_bounds = array<i64: 1, 32>}, {pipeline_mode = #tpu.pipeline_mode<synchronous>, transform_indices = @transform_5, window_bounds = array<i64: 32, 32>}, {pipeline_mode = #tpu.pipeline_mode<synchronous>, transform_indices = @transform_6, window_bounds = array<i64: 128, 32>}, {pipeline_mode = #tpu.pipeline_mode<synchronous>, transform_indices = @transform_7, window_bounds = array<i64: 128, 32>}, {pipeline_mode = #tpu.pipeline_mode<synchronous>, transform_indices = @transform_8, window_bounds = array<i64: 1, 32>}, {pipeline_mode = #tpu.pipeline_mode<synchronous>, transform_indices = @transform_9, window_bounds = array<i64: 32, 32>}, {pipeline_mode = #tpu.pipeline_mode<synchronous>, transform_indices = @transform_10, window_bounds = array<i64: 1, 32>}, {pipeline_mode = #tpu.pipeline_mode<synchronous>, transform_indices = @transform_11, window_bounds = array<i64: 32, 128>}, {pipeline_mode = #tpu.pipeline_mode<synchronous>, transform_indices = @transform_12, window_bounds = array<i64: 1, 128>}, {transform_indices = @transform_13, window_bounds = array<i64: 128, 128>}]} {
    %c0 = arith.constant 0 : index
    %c0_0 = arith.constant 0 : index
    %0 = vector.load %arg2[%c0, %c0_0] : memref<128x128xf32, #tpu.memory_space<vmem>>, vector<128x128xf32>
    %c0_1 = arith.constant 0 : index
    %c0_2 = arith.constant 0 : index
    %1 = vector.load %arg1[%c0_1, %c0_2] : memref<128x8xf32, #tpu.memory_space<vmem>>, vector<128x8xf32>
    %c0_3 = arith.constant 0 : index
    %c0_4 = arith.constant 0 : index
    %2 = vector.load %arg4[%c0_3, %c0_4] : memref<8x32xf32, #tpu.memory_space<vmem>>, vector<8x32xf32>
    %cst = arith.constant dense<0.000000e+00> : vector<128x32xf32>
    %3 = tpu.matmul %1, %2, %cst {dimension_numbers = #tpu.dot_dimension_numbers<[1], [0], [0], [1], [0, 0, 1, 1], [], []>} : vector<128x8xf32>, vector<8x32xf32>, vector<128x32xf32> -> vector<128x32xf32>
    %c0_5 = arith.constant 0 : index
    %c0_6 = arith.constant 0 : index
    %4 = vector.load %arg5[%c0_5, %c0_6] : memref<1x32xf32, #tpu.memory_space<vmem>>, vector<1x32xf32>
    %5 = vector.broadcast %4 : vector<1x32xf32> to vector<128x32xf32>
    %6 = arith.addf %3, %5 : vector<128x32xf32>
    %cst_7 = arith.constant 0.000000e+00 : f32
    %7 = vector.broadcast %cst_7 : f32 to vector<128x32xf32>
    %8 = arith.maximumf %6, %7 : vector<128x32xf32>
    %c0_8 = arith.constant 0 : index
    %c0_9 = arith.constant 0 : index
    %9 = vector.load %arg6[%c0_8, %c0_9] : memref<32x32xf32, #tpu.memory_space<vmem>>, vector<32x32xf32>
    %cst_10 = arith.constant dense<0.000000e+00> : vector<128x32xf32>
    %10 = tpu.matmul %8, %9, %cst_10 {dimension_numbers = #tpu.dot_dimension_numbers<[1], [0], [0], [1], [0, 0, 1, 1], [], []>} : vector<128x32xf32>, vector<32x32xf32>, vector<128x32xf32> -> vector<128x32xf32>
    %c0_11 = arith.constant 0 : index
    %c0_12 = arith.constant 0 : index
    %11 = vector.load %arg7[%c0_11, %c0_12] : memref<128x32xf32, #tpu.memory_space<vmem>>, vector<128x32xf32>
    %cst_13 = arith.constant dense<0.000000e+00> : vector<128x32xf32>
    %12 = tpu.matmul %0, %11, %cst_13 {dimension_numbers = #tpu.dot_dimension_numbers<[1], [0], [0], [1], [0, 0, 1, 1], [], []>} : vector<128x128xf32>, vector<128x32xf32>, vector<128x32xf32> -> vector<128x32xf32>
    %13 = arith.addf %10, %12 : vector<128x32xf32>
    %c0_14 = arith.constant 0 : index
    %c0_15 = arith.constant 0 : index
    %14 = vector.load %arg3[%c0_14, %c0_15] : memref<128x128xf32, #tpu.memory_space<vmem>>, vector<128x128xf32>
    %c0_16 = arith.constant 0 : index
    %c0_17 = arith.constant 0 : index
    %15 = vector.load %arg8[%c0_16, %c0_17] : memref<128x32xf32, #tpu.memory_space<vmem>>, vector<128x32xf32>
    %cst_18 = arith.constant dense<0.000000e+00> : vector<128x32xf32>
    %16 = tpu.matmul %14, %15, %cst_18 {dimension_numbers = #tpu.dot_dimension_numbers<[1], [0], [0], [1], [0, 0, 1, 1], [], []>} : vector<128x128xf32>, vector<128x32xf32>, vector<128x32xf32> -> vector<128x32xf32>
    %17 = arith.addf %13, %16 : vector<128x32xf32>
    %c0_19 = arith.constant 0 : index
    %c0_20 = arith.constant 0 : index
    %18 = vector.load %arg9[%c0_19, %c0_20] : memref<1x32xf32, #tpu.memory_space<vmem>>, vector<1x32xf32>
    %19 = vector.broadcast %18 : vector<1x32xf32> to vector<128x32xf32>
    %20 = arith.addf %17, %19 : vector<128x32xf32>
    %cst_21 = arith.constant 0.000000e+00 : f32
    %21 = vector.broadcast %cst_21 : f32 to vector<128x32xf32>
    %22 = arith.maximumf %20, %21 : vector<128x32xf32>
    %c0_22 = arith.constant 0 : index
    %c0_23 = arith.constant 0 : index
    %23 = vector.load %arg10[%c0_22, %c0_23] : memref<32x32xf32, #tpu.memory_space<vmem>>, vector<32x32xf32>
    %cst_24 = arith.constant dense<0.000000e+00> : vector<128x32xf32>
    %24 = tpu.matmul %22, %23, %cst_24 {dimension_numbers = #tpu.dot_dimension_numbers<[1], [0], [0], [1], [0, 0, 1, 1], [], []>} : vector<128x32xf32>, vector<32x32xf32>, vector<128x32xf32> -> vector<128x32xf32>
    %c0_25 = arith.constant 0 : index
    %c0_26 = arith.constant 0 : index
    %25 = vector.load %arg11[%c0_25, %c0_26] : memref<1x32xf32, #tpu.memory_space<vmem>>, vector<1x32xf32>
    %26 = vector.broadcast %25 : vector<1x32xf32> to vector<128x32xf32>
    %27 = arith.addf %24, %26 : vector<128x32xf32>
    %cst_27 = arith.constant 0.000000e+00 : f32
    %28 = vector.broadcast %cst_27 : f32 to vector<128x32xf32>
    %29 = arith.maximumf %27, %28 : vector<128x32xf32>
    %c0_28 = arith.constant 0 : index
    %c0_29 = arith.constant 0 : index
    %30 = vector.load %arg12[%c0_28, %c0_29] : memref<32x128xf32, #tpu.memory_space<vmem>>, vector<32x128xf32>
    %cst_30 = arith.constant dense<0.000000e+00> : vector<128x128xf32>
    %31 = tpu.matmul %29, %30, %cst_30 {dimension_numbers = #tpu.dot_dimension_numbers<[1], [0], [0], [1], [0, 0, 1, 1], [], []>} : vector<128x32xf32>, vector<32x128xf32>, vector<128x128xf32> -> vector<128x128xf32>
    %c0_31 = arith.constant 0 : index
    %c0_32 = arith.constant 0 : index
    %32 = vector.load %arg13[%c0_31, %c0_32] : memref<1x128xf32, #tpu.memory_space<vmem>>, vector<1x128xf32>
    %33 = vector.broadcast %32 : vector<1x128xf32> to vector<128x128xf32>
    %34 = arith.addf %31, %33 : vector<128x128xf32>
    %35 = arith.mulf %0, %34 : vector<128x128xf32>
    %36 = arith.truncf %35 : vector<128x128xf32> to vector<128x128xbf16>
    %c0_33 = arith.constant 0 : index
    %c0_34 = arith.constant 0 : index
    %37 = vector.load %arg14[%c0_33, %c0_34] : memref<128x128xbf16, #tpu.memory_space<vmem>>, vector<128x128xbf16>
    tpu.vector_store %arg14[%c0_33, %c0_34], %36 {strides = array<i32>} : memref<128x128xbf16, #tpu.memory_space<vmem>>, vector<128x128xbf16>,
    return
  }
  func.func @transform_0(%arg0: i32) -> (i32, i32) {
    %c0_i32 = arith.constant 0 : i32
    %c0_i32_0 = arith.constant 0 : i32
    return %arg0, %c0_i32 : i32, i32
  }
  func.func @transform_1(%arg0: i32) -> (i32, i32) {
    %c0_i32 = arith.constant 0 : i32
    %c0_i32_0 = arith.constant 0 : i32
    return %arg0, %c0_i32 : i32, i32
  }
  func.func @transform_2(%arg0: i32) -> (i32, i32) {
    %c0_i32 = arith.constant 0 : i32
    %c0_i32_0 = arith.constant 0 : i32
    return %arg0, %c0_i32 : i32, i32
  }
  func.func @transform_3(%arg0: i32) -> (i32, i32) {
    %c0_i32 = arith.constant 0 : i32
    %c0_i32_0 = arith.constant 0 : i32
    %c0_i32_1 = arith.constant 0 : i32
    return %c0_i32, %c0_i32_0 : i32, i32
  }
  func.func @transform_4(%arg0: i32) -> (i32, i32) {
    %c0_i32 = arith.constant 0 : i32
    %c0_i32_0 = arith.constant 0 : i32
    %c0_i32_1 = arith.constant 0 : i32
    return %c0_i32, %c0_i32_0 : i32, i32
  }
  func.func @transform_5(%arg0: i32) -> (i32, i32) {
    %c0_i32 = arith.constant 0 : i32
    %c0_i32_0 = arith.constant 0 : i32
    %c0_i32_1 = arith.constant 0 : i32
    return %c0_i32, %c0_i32_0 : i32, i32
  }
  func.func @transform_6(%arg0: i32) -> (i32, i32) {
    %c0_i32 = arith.constant 0 : i32
    %c0_i32_0 = arith.constant 0 : i32
    %c0_i32_1 = arith.constant 0 : i32
    return %c0_i32, %c0_i32_0 : i32, i32
  }
  func.func @transform_7(%arg0: i32) -> (i32, i32) {
    %c0_i32 = arith.constant 0 : i32
    %c0_i32_0 = arith.constant 0 : i32
    %c0_i32_1 = arith.constant 0 : i32
    return %c0_i32, %c0_i32_0 : i32, i32
  }
  func.func @transform_8(%arg0: i32) -> (i32, i32) {
    %c0_i32 = arith.constant 0 : i32
    %c0_i32_0 = arith.constant 0 : i32
    %c0_i32_1 = arith.constant 0 : i32
    return %c0_i32, %c0_i32_0 : i32, i32
  }
  func.func @transform_9(%arg0: i32) -> (i32, i32) {
    %c0_i32 = arith.constant 0 : i32
    %c0_i32_0 = arith.constant 0 : i32
    %c0_i32_1 = arith.constant 0 : i32
    return %c0_i32, %c0_i32_0 : i32, i32
  }
  func.func @transform_10(%arg0: i32) -> (i32, i32) {
    %c0_i32 = arith.constant 0 : i32
    %c0_i32_0 = arith.constant 0 : i32
    %c0_i32_1 = arith.constant 0 : i32
    return %c0_i32, %c0_i32_0 : i32, i32
  }
  func.func @transform_11(%arg0: i32) -> (i32, i32) {
    %c0_i32 = arith.constant 0 : i32
    %c0_i32_0 = arith.constant 0 : i32
    %c0_i32_1 = arith.constant 0 : i32
    return %c0_i32, %c0_i32_0 : i32, i32
  }
  func.func @transform_12(%arg0: i32) -> (i32, i32) {
    %c0_i32 = arith.constant 0 : i32
    %c0_i32_0 = arith.constant 0 : i32
    %c0_i32_1 = arith.constant 0 : i32
    return %c0_i32, %c0_i32_0 : i32, i32
  }
  func.func @transform_13(%arg0: i32) -> (i32, i32) {
    %c0_i32 = arith.constant 0 : i32
    %c0_i32_0 = arith.constant 0 : i32
    return %arg0, %c0_i32 : i32, i32
  }
}

module attributes {stable_mosaic.version = 11 : i64} {
  func.func @_aggregate_phi_kernel(%arg0: i32, %arg1: memref<1xi32, #tpu.memory_space<smem>>, %arg2: memref<1xi32, #tpu.memory_space<smem>>, %arg3: memref<1xi32, #tpu.memory_space<smem>>, %arg4: memref<1xi32, #tpu.memory_space<smem>>, %arg5: memref<1x128xi32, #tpu.memory_space<vmem>>, %arg6: memref<128x128xbf16, #tpu.memory_space<vmem>>, %arg7: memref<16x128xf32, #tpu.memory_space<vmem>>, %arg8: memref<128x32xf32, #tpu.memory_space<vmem>>, %arg9: memref<128x32xf32, #tpu.memory_space<vmem>>, %arg10: memref<1x32xf32, #tpu.memory_space<vmem>>, %arg11: memref<32x128xf32, #tpu.memory_space<vmem>>, %arg12: memref<1x128xf32, #tpu.memory_space<vmem>>, %arg13: memref<16x128xf32, #tpu.memory_space<vmem>>, %arg14: memref<16x128xf32, #tpu.memory_space<vmem>>) attributes {dimension_semantics = [#tpu.dimension_semantics<arbitrary>], iteration_bounds = array<i64: 1>, scalar_prefetch = 4 : i64, scratch_operands = 1 : i64, tpu.core_type = #tpu.core_type<tc>, window_params = [{transform_indices = @transform_0, window_bounds = array<i64: 1, 128>}, {transform_indices = @transform_1, window_bounds = array<i64: 128, 128>}, {transform_indices = @transform_2, window_bounds = array<i64: 16, 128>}, {pipeline_mode = #tpu.pipeline_mode<synchronous>, transform_indices = @transform_3, window_bounds = array<i64: 128, 32>}, {pipeline_mode = #tpu.pipeline_mode<synchronous>, transform_indices = @transform_4, window_bounds = array<i64: 128, 32>}, {pipeline_mode = #tpu.pipeline_mode<synchronous>, transform_indices = @transform_5, window_bounds = array<i64: 1, 32>}, {pipeline_mode = #tpu.pipeline_mode<synchronous>, transform_indices = @transform_6, window_bounds = array<i64: 32, 128>}, {pipeline_mode = #tpu.pipeline_mode<synchronous>, transform_indices = @transform_7, window_bounds = array<i64: 1, 128>}, {transform_indices = @transform_8, window_bounds = array<i64: 16, 128>}]} {
    %0 = arith.index_cast %arg0 : i32 to index
    %1 = memref.load %arg3[%0] : memref<1xi32, #tpu.memory_space<smem>>
    %c1_i32 = arith.constant 1 : i32
    %2 = arith.cmpi eq, %1, %c1_i32 : i32
    %3 = arith.extui %2 : i1 to i32
    %c0_i32 = arith.constant 0 : i32
    %4 = arith.cmpi ne, %3, %c0_i32 : i32
    scf.if %4 {
      %cst_11 = arith.constant 0.000000e+00 : f32
      %28 = vector.broadcast %cst_11 : f32 to vector<16x128xf32>
      %c0_12 = arith.constant 0 : index
      %c0_13 = arith.constant 0 : index
      %29 = vector.load %arg14[%c0_12, %c0_13] : memref<16x128xf32, #tpu.memory_space<vmem>>, vector<16x128xf32>
      tpu.vector_store %arg14[%c0_12, %c0_13], %28 {strides = array<i32>} : memref<16x128xf32, #tpu.memory_space<vmem>>, vector<16x128xf32>,
    } else {
    }
    %5 = arith.index_cast %arg0 : i32 to index
    %6 = memref.load %arg1[%5] : memref<1xi32, #tpu.memory_space<smem>>
    %c16_i32 = arith.constant 16 : i32
    %7 = arith.muli %6, %c16_i32 : i32
    %8 = tpu.iota {dimensions = array<i32: 0>} : vector<16x128xi32>
    %9 = vector.broadcast %7 : i32 to vector<16x128xi32>
    %10 = arith.addi %9, %8 : vector<16x128xi32>
    %c0 = arith.constant 0 : index
    %c0_0 = arith.constant 0 : index
    %11 = vector.load %arg5[%c0, %c0_0] : memref<1x128xi32, #tpu.memory_space<vmem>>, vector<1x128xi32>
    %12 = vector.broadcast %11 : vector<1x128xi32> to vector<16x128xi32>
    %13 = arith.cmpi eq, %12, %10 : vector<16x128xi32>
    %cst = arith.constant 1.000000e+00 : f32
    %cst_1 = arith.constant 0.000000e+00 : f32
    %14 = vector.broadcast %cst : f32 to vector<16x128xf32>
    %15 = vector.broadcast %cst_1 : f32 to vector<16x128xf32>
    %16 = arith.select %13, %14, %15 : vector<16x128xi1>, vector<16x128xf32>
    %17 = arith.truncf %16 : vector<16x128xf32> to vector<16x128xbf16>
    %c0_2 = arith.constant 0 : index
    %c0_3 = arith.constant 0 : index
    %18 = vector.load %arg14[%c0_2, %c0_3] : memref<16x128xf32, #tpu.memory_space<vmem>>, vector<16x128xf32>
    %c0_4 = arith.constant 0 : index
    %c0_5 = arith.constant 0 : index
    %19 = vector.load %arg6[%c0_4, %c0_5] : memref<128x128xbf16, #tpu.memory_space<vmem>>, vector<128x128xbf16>
    %cst_6 = arith.constant dense<0.000000e+00> : vector<16x128xf32>
    %20 = tpu.matmul %17, %19, %cst_6 {dimension_numbers = #tpu.dot_dimension_numbers<[1], [0], [0], [1], [0, 0, 1, 1], [], []>} : vector<16x128xbf16>, vector<128x128xbf16>, vector<16x128xf32> -> vector<16x128xf32>
    %21 = arith.addf %18, %20 : vector<16x128xf32>
    %c0_7 = arith.constant 0 : index
    %c0_8 = arith.constant 0 : index
    %22 = vector.load %arg14[%c0_7, %c0_8] : memref<16x128xf32, #tpu.memory_space<vmem>>, vector<16x128xf32>
    tpu.vector_store %arg14[%c0_7, %c0_8], %21 {strides = array<i32>} : memref<16x128xf32, #tpu.memory_space<vmem>>, vector<16x128xf32>,
    %23 = arith.index_cast %arg0 : i32 to index
    %24 = memref.load %arg4[%23] : memref<1xi32, #tpu.memory_space<smem>>
    %c1_i32_9 = arith.constant 1 : i32
    %25 = arith.cmpi eq, %24, %c1_i32_9 : i32
    %26 = arith.extui %25 : i1 to i32
    %c0_i32_10 = arith.constant 0 : i32
    %27 = arith.cmpi ne, %26, %c0_i32_10 : i32
    scf.if %27 {
      %c0_11 = arith.constant 0 : index
      %c0_12 = arith.constant 0 : index
      %28 = vector.load %arg7[%c0_11, %c0_12] : memref<16x128xf32, #tpu.memory_space<vmem>>, vector<16x128xf32>
      %c0_13 = arith.constant 0 : index
      %c0_14 = arith.constant 0 : index
      %29 = vector.load %arg8[%c0_13, %c0_14] : memref<128x32xf32, #tpu.memory_space<vmem>>, vector<128x32xf32>
      %cst_15 = arith.constant dense<0.000000e+00> : vector<16x32xf32>
      %30 = tpu.matmul %28, %29, %cst_15 {dimension_numbers = #tpu.dot_dimension_numbers<[1], [0], [0], [1], [0, 0, 1, 1], [], []>} : vector<16x128xf32>, vector<128x32xf32>, vector<16x32xf32> -> vector<16x32xf32>
      %c0_16 = arith.constant 0 : index
      %c0_17 = arith.constant 0 : index
      %31 = vector.load %arg14[%c0_16, %c0_17] : memref<16x128xf32, #tpu.memory_space<vmem>>, vector<16x128xf32>
      %c0_18 = arith.constant 0 : index
      %c0_19 = arith.constant 0 : index
      %32 = vector.load %arg9[%c0_18, %c0_19] : memref<128x32xf32, #tpu.memory_space<vmem>>, vector<128x32xf32>
      %cst_20 = arith.constant dense<0.000000e+00> : vector<16x32xf32>
      %33 = tpu.matmul %31, %32, %cst_20 {dimension_numbers = #tpu.dot_dimension_numbers<[1], [0], [0], [1], [0, 0, 1, 1], [], []>} : vector<16x128xf32>, vector<128x32xf32>, vector<16x32xf32> -> vector<16x32xf32>
      %34 = arith.addf %30, %33 : vector<16x32xf32>
      %c0_21 = arith.constant 0 : index
      %c0_22 = arith.constant 0 : index
      %35 = vector.load %arg10[%c0_21, %c0_22] : memref<1x32xf32, #tpu.memory_space<vmem>>, vector<1x32xf32>
      %36 = vector.broadcast %35 : vector<1x32xf32> to vector<16x32xf32>
      %37 = arith.addf %34, %36 : vector<16x32xf32>
      %cst_23 = arith.constant 0.000000e+00 : f32
      %38 = vector.broadcast %cst_23 : f32 to vector<16x32xf32>
      %39 = arith.maximumf %37, %38 : vector<16x32xf32>
      %c0_24 = arith.constant 0 : index
      %c0_25 = arith.constant 0 : index
      %40 = vector.load %arg11[%c0_24, %c0_25] : memref<32x128xf32, #tpu.memory_space<vmem>>, vector<32x128xf32>
      %cst_26 = arith.constant dense<0.000000e+00> : vector<16x128xf32>
      %41 = tpu.matmul %39, %40, %cst_26 {dimension_numbers = #tpu.dot_dimension_numbers<[1], [0], [0], [1], [0, 0, 1, 1], [], []>} : vector<16x32xf32>, vector<32x128xf32>, vector<16x128xf32> -> vector<16x128xf32>
      %c0_27 = arith.constant 0 : index
      %c0_28 = arith.constant 0 : index
      %42 = vector.load %arg12[%c0_27, %c0_28] : memref<1x128xf32, #tpu.memory_space<vmem>>, vector<1x128xf32>
      %43 = vector.broadcast %42 : vector<1x128xf32> to vector<16x128xf32>
      %44 = arith.addf %41, %43 : vector<16x128xf32>
      %c0_29 = arith.constant 0 : index
      %c0_30 = arith.constant 0 : index
      %45 = vector.load %arg13[%c0_29, %c0_30] : memref<16x128xf32, #tpu.memory_space<vmem>>, vector<16x128xf32>
      tpu.vector_store %arg13[%c0_29, %c0_30], %44 {strides = array<i32>} : memref<16x128xf32, #tpu.memory_space<vmem>>, vector<16x128xf32>,
    } else {
    }
    return
  }
  func.func @transform_0(%arg0: i32, %arg1: memref<1xi32, #tpu.memory_space<smem>>, %arg2: memref<1xi32, #tpu.memory_space<smem>>, %arg3: memref<1xi32, #tpu.memory_space<smem>>, %arg4: memref<1xi32, #tpu.memory_space<smem>>) -> (i32, i32) {
    %0 = arith.index_cast %arg0 : i32 to index
    %1 = memref.load %arg2[%0] : memref<1xi32, #tpu.memory_space<smem>>
    %c0_i32 = arith.constant 0 : i32
    %c0_i32_0 = arith.constant 0 : i32
    return %c0_i32, %1 : i32, i32
  }
  func.func @transform_1(%arg0: i32, %arg1: memref<1xi32, #tpu.memory_space<smem>>, %arg2: memref<1xi32, #tpu.memory_space<smem>>, %arg3: memref<1xi32, #tpu.memory_space<smem>>, %arg4: memref<1xi32, #tpu.memory_space<smem>>) -> (i32, i32) {
    %0 = arith.index_cast %arg0 : i32 to index
    %1 = memref.load %arg2[%0] : memref<1xi32, #tpu.memory_space<smem>>
    %c0_i32 = arith.constant 0 : i32
    %c0_i32_0 = arith.constant 0 : i32
    return %1, %c0_i32 : i32, i32
  }
  func.func @transform_2(%arg0: i32, %arg1: memref<1xi32, #tpu.memory_space<smem>>, %arg2: memref<1xi32, #tpu.memory_space<smem>>, %arg3: memref<1xi32, #tpu.memory_space<smem>>, %arg4: memref<1xi32, #tpu.memory_space<smem>>) -> (i32, i32) {
    %0 = arith.index_cast %arg0 : i32 to index
    %1 = memref.load %arg1[%0] : memref<1xi32, #tpu.memory_space<smem>>
    %c0_i32 = arith.constant 0 : i32
    %c0_i32_0 = arith.constant 0 : i32
    return %1, %c0_i32 : i32, i32
  }
  func.func @transform_3(%arg0: i32, %arg1: memref<1xi32, #tpu.memory_space<smem>>, %arg2: memref<1xi32, #tpu.memory_space<smem>>, %arg3: memref<1xi32, #tpu.memory_space<smem>>, %arg4: memref<1xi32, #tpu.memory_space<smem>>) -> (i32, i32) {
    %c0_i32 = arith.constant 0 : i32
    %c0_i32_0 = arith.constant 0 : i32
    %c0_i32_1 = arith.constant 0 : i32
    return %c0_i32, %c0_i32_0 : i32, i32
  }
  func.func @transform_4(%arg0: i32, %arg1: memref<1xi32, #tpu.memory_space<smem>>, %arg2: memref<1xi32, #tpu.memory_space<smem>>, %arg3: memref<1xi32, #tpu.memory_space<smem>>, %arg4: memref<1xi32, #tpu.memory_space<smem>>) -> (i32, i32) {
    %c0_i32 = arith.constant 0 : i32
    %c0_i32_0 = arith.constant 0 : i32
    %c0_i32_1 = arith.constant 0 : i32
    return %c0_i32, %c0_i32_0 : i32, i32
  }
  func.func @transform_5(%arg0: i32, %arg1: memref<1xi32, #tpu.memory_space<smem>>, %arg2: memref<1xi32, #tpu.memory_space<smem>>, %arg3: memref<1xi32, #tpu.memory_space<smem>>, %arg4: memref<1xi32, #tpu.memory_space<smem>>) -> (i32, i32) {
    %c0_i32 = arith.constant 0 : i32
    %c0_i32_0 = arith.constant 0 : i32
    %c0_i32_1 = arith.constant 0 : i32
    return %c0_i32, %c0_i32_0 : i32, i32
  }
  func.func @transform_6(%arg0: i32, %arg1: memref<1xi32, #tpu.memory_space<smem>>, %arg2: memref<1xi32, #tpu.memory_space<smem>>, %arg3: memref<1xi32, #tpu.memory_space<smem>>, %arg4: memref<1xi32, #tpu.memory_space<smem>>) -> (i32, i32) {
    %c0_i32 = arith.constant 0 : i32
    %c0_i32_0 = arith.constant 0 : i32
    %c0_i32_1 = arith.constant 0 : i32
    return %c0_i32, %c0_i32_0 : i32, i32
  }
  func.func @transform_7(%arg0: i32, %arg1: memref<1xi32, #tpu.memory_space<smem>>, %arg2: memref<1xi32, #tpu.memory_space<smem>>, %arg3: memref<1xi32, #tpu.memory_space<smem>>, %arg4: memref<1xi32, #tpu.memory_space<smem>>) -> (i32, i32) {
    %c0_i32 = arith.constant 0 : i32
    %c0_i32_0 = arith.constant 0 : i32
    %c0_i32_1 = arith.constant 0 : i32
    return %c0_i32, %c0_i32_0 : i32, i32
  }
  func.func @transform_8(%arg0: i32, %arg1: memref<1xi32, #tpu.memory_space<smem>>, %arg2: memref<1xi32, #tpu.memory_space<smem>>, %arg3: memref<1xi32, #tpu.memory_space<smem>>, %arg4: memref<1xi32, #tpu.memory_space<smem>>) -> (i32, i32) {
    %0 = arith.index_cast %arg0 : i32 to index
    %1 = memref.load %arg1[%0] : memref<1xi32, #tpu.memory_space<smem>>
    %c0_i32 = arith.constant 0 : i32
    %c0_i32_0 = arith.constant 0 : i32
    return %1, %c0_i32 : i32, i32
  }
}

</mosaic_0001>

<llo_original>
// kernel: smooth_conv_layer.3
$region0: #{smooth_conv_layer.3}
  #allocation0 [shape = 'u32[]', space=smem, size = 0x4, offset = 0x4, fixed_abs, tag = 'smem constant byte address 0x4 - core index']
  #allocation1 [shape = 'u32[144,128]{1,0:T(1,128)}', space=vmem, size = 0x12000, scoped, tag = 'internal scratch']
  #allocation2 [shape = 'f32[16,128]{1,0:T(8,128)}', space=vmem, size = 0x2000, scoped, tag = 'scratch operand']
  #allocation3 [shape = 's32[1]{0}', space=sflag, size = 0x4, scoped, tag = 'scoped memory for smooth_conv_layer.3']
  #allocation4 [shape = 's32[1]{0:T(128)S(6)}', space=smem, size = 0x200, scoped, tag = 'prefetched SMEM operand 0']
  #allocation5 [shape = 's32[1]{0:T(128)S(6)}', space=smem, size = 0x200, scoped, tag = 'prefetched SMEM operand 1']
  #allocation6 [shape = 's32[1]{0:T(128)S(6)}', space=smem, size = 0x200, scoped, tag = 'prefetched SMEM operand 2']
  #allocation7 [shape = 's32[1]{0:T(128)S(6)}', space=smem, size = 0x200, scoped, tag = 'prefetched SMEM operand 3']
  %s0 = inlined_call_operand.<no memory space> [shape: s32[1], index: 0, kind: input, shape index: {}]
  %s1 = inlined_call_operand.<no memory space> [shape: s32[1], index: 1, kind: input, shape index: {}]
  %s2 = inlined_call_operand.<no memory space> [shape: s32[1], index: 2, kind: input, shape index: {}]
  %s3 = inlined_call_operand.<no memory space> [shape: s32[1], index: 3, kind: input, shape index: {}]
  %s4 = inlined_call_operand.vmem [shape: s32[1,128], index: 4, kind: input, shape index: {}]
  %s5 = inlined_call_operand.vmem [shape: bf16[128,128], index: 5, kind: input, shape index: {}]
  %s6 = inlined_call_operand.vmem [shape: f32[16,128], index: 6, kind: input, shape index: {}]
  %s7 = inlined_call_operand.vmem [shape: f32[128,32], index: 7, kind: input, shape index: {}]
  %s8 = inlined_call_operand.vmem [shape: f32[128,32], index: 8, kind: input, shape index: {}]
  %s9 = inlined_call_operand.vmem [shape: f32[1,32], index: 9, kind: input, shape index: {}]
  %s10 = inlined_call_operand.vmem [shape: f32[32,128], index: 10, kind: input, shape index: {}]
  %s11 = inlined_call_operand.vmem [shape: f32[1,128], index: 11, kind: input, shape index: {}]
  %s12 = inlined_call_operand.vmem [shape: f32[16,128], index: 12, kind: output, shape index: {}]
  %s13 = sld [smem:[#allocation0]]
  $region50: #{smooth_conv_layer.3} parent=0
    _
  %s15 = ssub.s32 1, %s13
  %s16 = scalar_select 0, %s15, %s13
  %17 = sst [smem:[#allocation4]] %s0
  %18 = sst [smem:[#allocation5]] %s1
  %19 = sst [smem:[#allocation6]] %s2
  %20 = sst [smem:[#allocation7]] %s3
  // Predicated region
  $region2: #{smooth_conv_layer.3} parent=0 // pred_check
    _
  $region3: #{smooth_conv_layer.3} parent=0 // pred_check_branch
    %22 = sbr.rel (0) target = $region5
  $region4: #{smooth_conv_layer.3} parent=0 // pred_region
    %s23 = sld [smem:[#allocation5]]
    %p24 = scmp.lt.s32.totalorder %s23, 0
    %s25 = scalar_select %p24, %s23, 0
    %s26 = scalar_lea.vmem %s4, %s25
    %s27 = sld [smem:[#allocation5]]
  $region5: #{smooth_conv_layer.3} parent=0 // pred_fallthru
    _
  // Predicated region
  $region6: #{smooth_conv_layer.3} parent=0 // pred_check
    _
  $region7: #{smooth_conv_layer.3} parent=0 // pred_check_branch
    %29 = sbr.rel (0) target = $region9
  $region8: #{smooth_conv_layer.3} parent=0 // pred_region
    %s30 = sld [smem:[#allocation5]]
    %s31 = smul.u32 16, %s30
    %p32 = scmp.lt.s32.totalorder %s31, 15
    %s33 = scalar_select %p32, %s31, 15
    %s34 = smul.addr %s33, 4
    %s35 = scalar_lea.vmem %s5, %s34
    %s36 = sld [smem:[#allocation5]]
    %s37 = smul.u32 16, %s36
  $region9: #{smooth_conv_layer.3} parent=0 // pred_fallthru
    _
  // Predicated region
  $region10: #{smooth_conv_layer.3} parent=0 // pred_check
    _
  $region11: #{smooth_conv_layer.3} parent=0 // pred_check_branch
    %39 = sbr.rel (0) target = $region13
  $region12: #{smooth_conv_layer.3} parent=0 // pred_region
    %s40 = sld [smem:[#allocation4]]
    %s41 = smul.u32 2, %s40
    %p42 = scmp.lt.s32.totalorder %s41, 1
    %s43 = scalar_select %p42, %s41, 1
    %s44 = smul.addr %s43, 8
    %s45 = scalar_lea.vmem %s6, %s44
    %s46 = sld [smem:[#allocation4]]
    %s47 = smul.u32 2, %s46
  $region13: #{smooth_conv_layer.3} parent=0 // pred_fallthru
    _
  // Predicated region
  $region14: #{smooth_conv_layer.3} parent=0 // pred_check
    _
  $region15: #{smooth_conv_layer.3} parent=0 // pred_check_branch
    %49 = sbr.rel (0) target = $region17
  $region16: #{smooth_conv_layer.3} parent=0 // pred_region
    _
  $region17: #{smooth_conv_layer.3} parent=0 // pred_fallthru
    _
  // Predicated region
  $region18: #{smooth_conv_layer.3} parent=0 // pred_check
    _
  $region19: #{smooth_conv_layer.3} parent=0 // pred_check_branch
    %51 = sbr.rel (0) target = $region21
  $region20: #{smooth_conv_layer.3} parent=0 // pred_region
    _
  $region21: #{smooth_conv_layer.3} parent=0 // pred_fallthru
    _
  // Predicated region
  $region22: #{smooth_conv_layer.3} parent=0 // pred_check
    _
  $region23: #{smooth_conv_layer.3} parent=0 // pred_check_branch
    %53 = sbr.rel (0) target = $region25
  $region24: #{smooth_conv_layer.3} parent=0 // pred_region
    _
  $region25: #{smooth_conv_layer.3} parent=0 // pred_fallthru
    _
  // Predicated region
  $region26: #{smooth_conv_layer.3} parent=0 // pred_check
    _
  $region27: #{smooth_conv_layer.3} parent=0 // pred_check_branch
    %55 = sbr.rel (0) target = $region29
  $region28: #{smooth_conv_layer.3} parent=0 // pred_region
    _
  $region29: #{smooth_conv_layer.3} parent=0 // pred_fallthru
    _
  // Predicated region
  $region30: #{smooth_conv_layer.3} parent=0 // pred_check
    _
  $region31: #{smooth_conv_layer.3} parent=0 // pred_check_branch
    %57 = sbr.rel (0) target = $region33
  $region32: #{smooth_conv_layer.3} parent=0 // pred_region
    _
  $region33: #{smooth_conv_layer.3} parent=0 // pred_fallthru
    _
  %s58 = sld [smem:[#allocation5]]
  %p59 = scmp.lt.s32.totalorder %s58, 0
  %s60 = scalar_select %p59, %s58, 0
  %s61 = scalar_lea.vmem %s4, %s60
  %s62 = sld [smem:[#allocation5]]
  %s63 = smul.u32 16, %s62
  %p64 = scmp.lt.s32.totalorder %s63, 15
  %s65 = scalar_select %p64, %s63, 15
  %s66 = smul.addr %s65, 4
  %s67 = scalar_lea.vmem %s5, %s66
  %s68 = sld [smem:[#allocation4]]
  %s69 = smul.u32 2, %s68
  %p70 = scmp.lt.s32.totalorder %s69, 1
  %s71 = scalar_select %p70, %s69, 1
  %s72 = smul.addr %s71, 8
  %s73 = scalar_lea.vmem %s6, %s72
  %s74 = sld [smem:[#allocation4]]
  %s75 = smul.u32 2, %s74
  %p76 = scmp.lt.s32.totalorder %s75, 1
  %s77 = scalar_select %p76, %s75, 1
  %s78 = smul.addr %s77, 8
  %s79 = scalar_lea.vmem %s12, %s78
  %s80 = sld [smem:[#allocation5]]
  %p81 = scmp.lt.s32.totalorder %s80, 0
  %s82 = scalar_select %p81, %s80, 0
  %s83 = scalar_lea.vmem %s4, %s82
  %s84 = sld [smem:[#allocation5]]
  %s85 = sld [smem:[#allocation5]]
  %s86 = smul.u32 16, %s85
  %p87 = scmp.lt.s32.totalorder %s86, 15
  %s88 = scalar_select %p87, %s86, 15
  %s89 = smul.addr %s88, 4
  %s90 = scalar_lea.vmem %s5, %s89
  %s91 = sld [smem:[#allocation5]]
  %s92 = smul.u32 16, %s91
  %s93 = sld [smem:[#allocation4]]
  %s94 = smul.u32 2, %s93
  %p95 = scmp.lt.s32.totalorder %s94, 1
  %s96 = scalar_select %p95, %s94, 1
  %s97 = smul.addr %s96, 8
  %s98 = scalar_lea.vmem %s6, %s97
  %s99 = sld [smem:[#allocation4]]
  %s100 = smul.u32 2, %s99
  %s101 = sld [smem:[#allocation4]]
  %s102 = smul.u32 2, %s101
  %p103 = scmp.lt.s32.totalorder %s102, 1
  %s104 = scalar_select %p103, %s102, 1
  %s105 = smul.addr %s104, 8
  %s106 = scalar_lea.vmem %s12, %s105
  %s107 = sld [smem:[#allocation4]]
  %s108 = smul.u32 2, %s107
  %s110 = sld [smem:[#allocation6]]
  %p111 = scmp.eq.s32.totalorder %s110, 1
  // Predicated region
  $region34: #{smooth_conv_layer.3} parent=0 // pred_check
    %p112 = pneg %p111
  $region35: #{smooth_conv_layer.3} parent=0 // pred_check_branch
    %114 = sbr.rel (%p112) target = $region37
  $region36: #{smooth_conv_layer.3} parent=0 // pred_region
    %115 = vst [vmem:[#allocation2] sm:$0xff] 0.0
    %116 = vst [vmem:[#allocation2 + $0x8] sm:$0xff] 0.0
  $region37: #{smooth_conv_layer.3} parent=0 // pred_fallthru
    _
  %s117 = sld [smem:[#allocation4]]
  %s118 = smul.u32 %s117, 16
  %v119 = vlaneseq
  %v120 = vshrl.u32 %v119, 7
  %v121 = vadd.s32 %v120, 8
  %v122 = vstv %s118
  %v123 = vadd.s32 %v122, %v120
  %v124 = vadd.s32 %v122, %v121
  %v125 = vld [vmem:[%s83] sm:$0x1]
  %v126 = vlaneseq
  %v127 = vshrl.u32 %v126, 7
  %v128 = vsub.s32 0, %v127
  %v129 = vrot.slane %v125, %v128
  %vm130 = vcmp.eq.s32.totalorder %v129, %v123
  %vm131 = vcmp.eq.s32.totalorder %v129, %v124
  %v132 = vsel %vm130, 1.0, 0.0
  %v133 = vsel %vm131, 1.0, 0.0
  %v134 = vpack.c.bf16 %v133, %v132
  %v135 = vld [vmem:[#allocation2] sm:$0xff]
  %v136 = vld [vmem:[#allocation2 + $0x8] sm:$0xff]
  %v137 = vld [vmem:[%s90] sm:$0xf]
  %v138 = vld [vmem:[%s90 + $0x4] sm:$0xf]
  %v139 = vld [vmem:[%s90 + $0x8] sm:$0xf]
  %v140 = vld [vmem:[%s90 + $0xc] sm:$0xf]
  %v141 = vld [vmem:[%s90 + $0x10] sm:$0xf]
  %v142 = vld [vmem:[%s90 + $0x14] sm:$0xf]
  %v143 = vld [vmem:[%s90 + $0x18] sm:$0xf]
  %v144 = vld [vmem:[%s90 + $0x1c] sm:$0xf]
  %v145 = vld [vmem:[%s90 + $0x20] sm:$0xf]
  %v146 = vld [vmem:[%s90 + $0x24] sm:$0xf]
  %v147 = vld [vmem:[%s90 + $0x28] sm:$0xf]
  %v148 = vld [vmem:[%s90 + $0x2c] sm:$0xf]
  %v149 = vld [vmem:[%s90 + $0x30] sm:$0xf]
  %v150 = vld [vmem:[%s90 + $0x34] sm:$0xf]
  %v151 = vld [vmem:[%s90 + $0x38] sm:$0xf]
  %v152 = vld [vmem:[%s90 + $0x3c] sm:$0xf]
  %v169 = vunpack.c.l.b16 %v137
  %v170 = vunpack.c.l.b16 %v138
  %v171 = vunpack.c.l.b16 %v139
  %v172 = vunpack.c.l.b16 %v140
  %v173 = vunpack.c.l.b16 %v141
  %v174 = vunpack.c.l.b16 %v142
  %v175 = vunpack.c.l.b16 %v143
  %v176 = vunpack.c.l.b16 %v144
  %v177 = vunpack.c.l.b16 %v145
  %v178 = vunpack.c.l.b16 %v146
  %v179 = vunpack.c.l.b16 %v147
  %v180 = vunpack.c.l.b16 %v148
  %v181 = vunpack.c.l.b16 %v149
  %v182 = vunpack.c.l.b16 %v150
  %v183 = vunpack.c.l.b16 %v151
  %v184 = vunpack.c.l.b16 %v152
  %v185 = vpack.c.b16 %v170, %v169
  %v186 = vpack.c.b16 %v172, %v171
  %v187 = vpack.c.b16 %v174, %v173
  %v188 = vpack.c.b16 %v176, %v175
  %v189 = vpack.c.b16 %v178, %v177
  %v190 = vpack.c.b16 %v180, %v179
  %v191 = vpack.c.b16 %v182, %v181
  %v192 = vpack.c.b16 %v184, %v183
  %201 = vmatprep.subr.bf16.mxu0 0
  %202 = vmatpush1.bf16.msra.mxu0 %v185
  %203 = vmatprep.subr.bf16.mxu0 0
  %204 = vmatpush1.bf16.msra.mxu0 %v186
  %205 = vmatprep.subr.bf16.mxu0 0
  %206 = vmatpush1.bf16.msra.mxu0 %v187
  %207 = vmatprep.subr.bf16.mxu0 0
  %208 = vmatpush1.bf16.msra.mxu0 %v188
  %209 = vmatprep.subr.bf16.mxu0 0
  %210 = vmatpush1.bf16.msra.mxu0 %v189
  %211 = vmatprep.subr.bf16.mxu0 0
  %212 = vmatpush1.bf16.msra.mxu0 %v190
  %213 = vmatprep.subr.bf16.mxu0 0
  %214 = vmatpush1.bf16.msra.mxu0 %v191
  %215 = vmatprep.subr.bf16.mxu0 0
  %216 = vmatpush1.bf16.msra.mxu0 %v192
  %217 = vmatprep.subr.bf16.mxu0 0
  %218 = vmatpush1.bf16.msra.mxu0 0
  %219 = vmatprep.subr.bf16.mxu0 0
  %220 = vmatpush1.bf16.msra.mxu0 0
  %221 = vmatprep.subr.bf16.mxu0 0
  %222 = vmatpush1.bf16.msra.mxu0 0
  %223 = vmatprep.subr.bf16.mxu0 0
  %224 = vmatpush1.bf16.msra.mxu0 0
  %225 = vmatprep.subr.bf16.mxu0 0
  %226 = vmatpush1.bf16.msra.mxu0 0
  %227 = vmatprep.subr.bf16.mxu0 0
  %228 = vmatpush1.bf16.msra.mxu0 0
  %229 = vmatprep.subr.bf16.mxu0 0
  %230 = vmatpush1.bf16.msra.mxu0 0
  %231 = vmatprep.subr.bf16.mxu0 0
  %232 = vmatpush1.bf16.msra.mxu0 0
  %233 = vmatprep.mubr.bf16.mxu0 0
  %234 = vmatmul.mubr.bf16.gmra.mrb[0].mxu0 %v134
  %v235 = vpop.f32.mrb[0].mxu0
  %v236 = vadd.f32 0.0, %v235
  %v237 = vpop.f32.mrb[0].mxu0
  %v238 = vpop.f32.mrb[0].mxu0
  %v239 = vadd.f32 0.0, %v238
  %v240 = vpop.f32.mrb[0].mxu0
  %241 = vdwg.mxu0
  %v242 = vadd.f32 %v135, %v236
  %v243 = vadd.f32 %v136, %v239
  %244 = vst [vmem:[#allocation2] sm:$0xff] %v242
  %245 = vst [vmem:[#allocation2 + $0x8] sm:$0xff] %v243
  %s246 = sld [smem:[#allocation7]]
  %p247 = scmp.eq.s32.totalorder %s246, 1
  // Predicated region
  $region38: #{smooth_conv_layer.3} parent=0 // pred_check
    %p248 = pneg %p247
  $region39: #{smooth_conv_layer.3} parent=0 // pred_check_branch
    %250 = sbr.rel (%p248) target = $region41
  $region40: #{smooth_conv_layer.3} parent=0 // pred_region
    %v251 = vld [vmem:[%s98] sm:$0xff]
    %v252 = vld [vmem:[%s98 + $0x8] sm:$0xff]
    %v253 = vld [vmem:[%s7] sm:$0xff]
    %v254 = vld [vmem:[%s7 + $0x8] sm:$0xff]
    %v255 = vld [vmem:[%s7 + $0x10] sm:$0xff]
    %v256 = vld [vmem:[%s7 + $0x18] sm:$0xff]
    %v257 = vld [vmem:[%s7 + $0x20] sm:$0xff]
    %v258 = vld [vmem:[%s7 + $0x28] sm:$0xff]
    %v259 = vld [vmem:[%s7 + $0x30] sm:$0xff]
    %v260 = vld [vmem:[%s7 + $0x38] sm:$0xff]
    %v261 = vld [vmem:[%s7 + $0x40] sm:$0xff]
    %v262 = vld [vmem:[%s7 + $0x48] sm:$0xff]
    %v263 = vld [vmem:[%s7 + $0x50] sm:$0xff]
    %v264 = vld [vmem:[%s7 + $0x58] sm:$0xff]
    %v265 = vld [vmem:[%s7 + $0x60] sm:$0xff]
    %v266 = vld [vmem:[%s7 + $0x68] sm:$0xff]
    %v267 = vld [vmem:[%s7 + $0x70] sm:$0xff]
    %v268 = vld [vmem:[%s7 + $0x78] sm:$0xff]
    %v269 = vld [vmem:[#allocation2] sm:$0xff]
    %v270 = vld [vmem:[#allocation2 + $0x8] sm:$0xff]
    %v271 = vld [vmem:[%s8] sm:$0xff]
    %v272 = vld [vmem:[%s8 + $0x8] sm:$0xff]
    %v273 = vld [vmem:[%s8 + $0x10] sm:$0xff]
    %v274 = vld [vmem:[%s8 + $0x18] sm:$0xff]
    %v275 = vld [vmem:[%s8 + $0x20] sm:$0xff]
    %v276 = vld [vmem:[%s8 + $0x28] sm:$0xff]
    %v277 = vld [vmem:[%s8 + $0x30] sm:$0xff]
    %v278 = vld [vmem:[%s8 + $0x38] sm:$0xff]
    %v279 = vld [vmem:[%s8 + $0x40] sm:$0xff]
    %v280 = vld [vmem:[%s8 + $0x48] sm:$0xff]
    %v281 = vld [vmem:[%s8 + $0x50] sm:$0xff]
    %v282 = vld [vmem:[%s8 + $0x58] sm:$0xff]
    %v283 = vld [vmem:[%s8 + $0x60] sm:$0xff]
    %v284 = vld [vmem:[%s8 + $0x68] sm:$0xff]
    %v285 = vld [vmem:[%s8 + $0x70] sm:$0xff]
    %v286 = vld [vmem:[%s8 + $0x78] sm:$0xff]
    %287 = vmatprep.subr.mxu0 0.0
    %288 = vmatpush1.msra.mxu0 %v271
    %289 = vmatprep.subr.mxu0 0.0
    %290 = vmatpush1.msra.mxu0 %v272
    %291 = vmatprep.subr.mxu0 0.0
    %292 = vmatpush1.msra.mxu0 %v273
    %293 = vmatprep.subr.mxu0 0.0
    %294 = vmatpush1.msra.mxu0 %v274
    %295 = vmatprep.subr.mxu0 0.0
    %296 = vmatpush1.msra.mxu0 %v275
    %297 = vmatprep.subr.mxu0 0.0
    %298 = vmatpush1.msra.mxu0 %v276
    %299 = vmatprep.subr.mxu0 0.0
    %300 = vmatpush1.msra.mxu0 %v277
    %301 = vmatprep.subr.mxu0 0.0
    %302 = vmatpush1.msra.mxu0 %v278
    %303 = vmatprep.subr.mxu0 0.0
    %304 = vmatpush1.msra.mxu0 %v279
    %305 = vmatprep.subr.mxu0 0.0
    %306 = vmatpush1.msra.mxu0 %v280
    %307 = vmatprep.subr.mxu0 0.0
    %308 = vmatpush1.msra.mxu0 %v281
    %309 = vmatprep.subr.mxu0 0.0
    %310 = vmatpush1.msra.mxu0 %v282
    %311 = vmatprep.subr.mxu0 0.0
    %312 = vmatpush1.msra.mxu0 %v283
    %313 = vmatprep.subr.mxu0 0.0
    %314 = vmatpush1.msra.mxu0 %v284
    %315 = vmatprep.subr.mxu0 0.0
    %316 = vmatpush1.msra.mxu0 %v285
    %317 = vmatprep.subr.mxu0 0.0
    %318 = vmatpush1.msra.mxu0 %v286
    %319 = vmatprep.subr.mxu0 0.0
    %320 = vmatpush1.msra.mxu0 0.0
    %321 = vmatprep.subr.mxu0 0.0
    %322 = vmatpush1.msra.mxu0 0.0
    %323 = vmatprep.subr.mxu0 0.0
    %324 = vmatpush1.msra.mxu0 0.0
    %325 = vmatprep.subr.mxu0 0.0
    %326 = vmatpush1.msra.mxu0 0.0
    %327 = vmatprep.subr.mxu0 0.0
    %328 = vmatpush1.msra.mxu0 0.0
    %329 = vmatprep.subr.mxu0 0.0
    %330 = vmatpush1.msra.mxu0 0.0
    %331 = vmatprep.subr.mxu0 0.0
    %332 = vmatpush1.msra.mxu0 0.0
    %333 = vmatprep.subr.mxu0 0.0
    %334 = vmatpush1.msra.mxu0 0.0
    %335 = vmatprep.subr.mxu0 0.0
    %336 = vmatpush1.msra.mxu0 0.0
    %337 = vmatprep.subr.mxu0 0.0
    %338 = vmatpush1.msra.mxu0 0.0
    %339 = vmatprep.subr.mxu0 0.0
    %340 = vmatpush1.msra.mxu0 0.0
    %341 = vmatprep.subr.mxu0 0.0
    %342 = vmatpush1.msra.mxu0 0.0
    %343 = vmatprep.subr.mxu0 0.0
    %344 = vmatpush1.msra.mxu0 0.0
    %345 = vmatprep.subr.mxu0 0.0
    %346 = vmatpush1.msra.mxu0 0.0
    %347 = vmatprep.subr.mxu0 0.0
    %348 = vmatpush1.msra.mxu0 0.0
    %349 = vmatprep.subr.mxu0 0.0
    %350 = vmatpush1.msra.mxu0 0.0
    %351 = vmatprep.mubr.f32.mxu0 0.0
    %352 = vmatmul.mubr.f32.gmra.mrb[0].mxu0 %v269
    %v353 = vpop.f32.mrb[0].mxu0
    %v354 = vadd.f32 0.0, %v353
    %v355 = vpop.f32.mrb[0].mxu0
    %356 = vmatprep.mubr.f32.mxu0 0.0
    %357 = vmatmul.mubr.f32.gmra.mrb[0].mxu0 %v270
    %v358 = vpop.f32.mrb[0].mxu0
    %v359 = vadd.f32 0.0, %v358
    %v360 = vpop.f32.mrb[0].mxu0
    %361 = vdwg.mxu0
    %362 = vmatprep.subr.mxu0 0.0
    %363 = vmatpush1.msra.mxu0 %v253
    %364 = vmatprep.subr.mxu0 0.0
    %365 = vmatpush1.msra.mxu0 %v254
    %366 = vmatprep.subr.mxu0 0.0
    %367 = vmatpush1.msra.mxu0 %v255
    %368 = vmatprep.subr.mxu0 0.0
    %369 = vmatpush1.msra.mxu0 %v256
    %370 = vmatprep.subr.mxu0 0.0
    %371 = vmatpush1.msra.mxu0 %v257
    %372 = vmatprep.subr.mxu0 0.0
    %373 = vmatpush1.msra.mxu0 %v258
    %374 = vmatprep.subr.mxu0 0.0
    %375 = vmatpush1.msra.mxu0 %v259
    %376 = vmatprep.subr.mxu0 0.0
    %377 = vmatpush1.msra.mxu0 %v260
    %378 = vmatprep.subr.mxu0 0.0
    %379 = vmatpush1.msra.mxu0 %v261
    %380 = vmatprep.subr.mxu0 0.0
    %381 = vmatpush1.msra.mxu0 %v262
    %382 = vmatprep.subr.mxu0 0.0
    %383 = vmatpush1.msra.mxu0 %v263
    %384 = vmatprep.subr.mxu0 0.0
    %385 = vmatpush1.msra.mxu0 %v264
    %386 = vmatprep.subr.mxu0 0.0
    %387 = vmatpush1.msra.mxu0 %v265
    %388 = vmatprep.subr.mxu0 0.0
    %389 = vmatpush1.msra.mxu0 %v266
    %390 = vmatprep.subr.mxu0 0.0
    %391 = vmatpush1.msra.mxu0 %v267
    %392 = vmatprep.subr.mxu0 0.0
    %393 = vmatpush1.msra.mxu0 %v268
    %394 = vmatprep.subr.mxu0 0.0
    %395 = vmatpush1.msra.mxu0 0.0
    %396 = vmatprep.subr.mxu0 0.0
    %397 = vmatpush1.msra.mxu0 0.0
    %398 = vmatprep.subr.mxu0 0.0
    %399 = vmatpush1.msra.mxu0 0.0
    %400 = vmatprep.subr.mxu0 0.0
    %401 = vmatpush1.msra.mxu0 0.0
    %402 = vmatprep.subr.mxu0 0.0
    %403 = vmatpush1.msra.mxu0 0.0
    %404 = vmatprep.subr.mxu0 0.0
    %405 = vmatpush1.msra.mxu0 0.0
    %406 = vmatprep.subr.mxu0 0.0
    %407 = vmatpush1.msra.mxu0 0.0
    %408 = vmatprep.subr.mxu0 0.0
    %409 = vmatpush1.msra.mxu0 0.0
    %410 = vmatprep.subr.mxu0 0.0
    %411 = vmatpush1.msra.mxu0 0.0
    %412 = vmatprep.subr.mxu0 0.0
    %413 = vmatpush1.msra.mxu0 0.0
    %414 = vmatprep.subr.mxu0 0.0
    %415 = vmatpush1.msra.mxu0 0.0
    %416 = vmatprep.subr.mxu0 0.0
    %417 = vmatpush1.msra.mxu0 0.0
    %418 = vmatprep.subr.mxu0 0.0
    %419 = vmatpush1.msra.mxu0 0.0
    %420 = vmatprep.subr.mxu0 0.0
    %421 = vmatpush1.msra.mxu0 0.0
    %422 = vmatprep.subr.mxu0 0.0
    %423 = vmatpush1.msra.mxu0 0.0
    %424 = vmatprep.subr.mxu0 0.0
    %425 = vmatpush1.msra.mxu0 0.0
    %426 = vmatprep.mubr.f32.mxu0 0.0
    %427 = vmatmul.mubr.f32.gmra.mrb[0].mxu0 %v251
    %v428 = vpop.f32.mrb[0].mxu0
    %v429 = vadd.f32 %v354, %v428
    %v430 = vpop.f32.mrb[0].mxu0
    %431 = vmatprep.mubr.f32.mxu0 0.0
    %432 = vmatmul.mubr.f32.gmra.mrb[0].mxu0 %v252
    %v433 = vpop.f32.mrb[0].mxu0
    %v434 = vadd.f32 %v359, %v433
    %v435 = vpop.f32.mrb[0].mxu0
    %436 = vdwg.mxu0
    %v437 = vld [vmem:[%s9] sm:$0x1]
    %v439 = vlaneseq
    %v440 = vshrl.u32 %v439, 7
    %v441 = vsub.s32 0, %v440
    %v442 = vrot.slane %v437, %v441
    %v444 = vadd.f32 %v429, %v442
    %v445 = vadd.f32 %v434, %v442
    %v446 = vmax.f32 %v444, 0.0
    %v447 = vmax.f32 %v445, 0.0
    %v448 = vld [vmem:[%s10] sm:$0xff]
    %v449 = vld [vmem:[%s10 + $0x8] sm:$0xff]
    %v450 = vld [vmem:[%s10 + $0x10] sm:$0xff]
    %v451 = vld [vmem:[%s10 + $0x18] sm:$0xff]
    %v452 = vld [vmem:[%s11] sm:$0x1]
    %v454 = vlaneseq
    %v455 = vshrl.u32 %v454, 7
    %v456 = vsub.s32 0, %v455
    %v457 = vrot.slane %v452, %v456
    %vm459 = vcmask 261120
    %v461 = vsel %vm459, %v446, 0
    %v464 = vsel %vm459, %v447, 0
    %466 = vmatprep.subr.mxu0 0.0
    %467 = vmatpush1.msra.mxu0 %v448
    %468 = vmatprep.subr.mxu0 0.0
    %469 = vmatpush1.msra.mxu0 %v449
    %470 = vmatprep.subr.mxu0 0.0
    %471 = vmatpush1.msra.mxu0 %v450
    %472 = vmatprep.subr.mxu0 0.0
    %473 = vmatpush1.msra.mxu0 %v451
    %474 = vmatprep.subr.mxu0 0.0
    %475 = vmatpush1.msra.mxu0 0.0
    %476 = vmatprep.subr.mxu0 0.0
    %477 = vmatpush1.msra.mxu0 0.0
    %478 = vmatprep.subr.mxu0 0.0
    %479 = vmatpush1.msra.mxu0 0.0
    %480 = vmatprep.subr.mxu0 0.0
    %481 = vmatpush1.msra.mxu0 0.0
    %482 = vmatprep.subr.mxu0 0.0
    %483 = vmatpush1.msra.mxu0 0.0
    %484 = vmatprep.subr.mxu0 0.0
    %485 = vmatpush1.msra.mxu0 0.0
    %486 = vmatprep.subr.mxu0 0.0
    %487 = vmatpush1.msra.mxu0 0.0
    %488 = vmatprep.subr.mxu0 0.0
    %489 = vmatpush1.msra.mxu0 0.0
    %490 = vmatprep.subr.mxu0 0.0
    %491 = vmatpush1.msra.mxu0 0.0
    %492 = vmatprep.subr.mxu0 0.0
    %493 = vmatpush1.msra.mxu0 0.0
    %494 = vmatprep.subr.mxu0 0.0
    %495 = vmatpush1.msra.mxu0 0.0
    %496 = vmatprep.subr.mxu0 0.0
    %497 = vmatpush1.msra.mxu0 0.0
    %498 = vmatprep.subr.mxu0 0.0
    %499 = vmatpush1.msra.mxu0 0.0
    %500 = vmatprep.subr.mxu0 0.0
    %501 = vmatpush1.msra.mxu0 0.0
    %502 = vmatprep.subr.mxu0 0.0
    %503 = vmatpush1.msra.mxu0 0.0
    %504 = vmatprep.subr.mxu0 0.0
    %505 = vmatpush1.msra.mxu0 0.0
    %506 = vmatprep.subr.mxu0 0.0
    %507 = vmatpush1.msra.mxu0 0.0
    %508 = vmatprep.subr.mxu0 0.0
    %509 = vmatpush1.msra.mxu0 0.0
    %510 = vmatprep.subr.mxu0 0.0
    %511 = vmatpush1.msra.mxu0 0.0
    %512 = vmatprep.subr.mxu0 0.0
    %513 = vmatpush1.msra.mxu0 0.0
    %514 = vmatprep.subr.mxu0 0.0
    %515 = vmatpush1.msra.mxu0 0.0
    %516 = vmatprep.subr.mxu0 0.0
    %517 = vmatpush1.msra.mxu0 0.0
    %518 = vmatprep.subr.mxu0 0.0
    %519 = vmatpush1.msra.mxu0 0.0
    %520 = vmatprep.subr.mxu0 0.0
    %521 = vmatpush1.msra.mxu0 0.0
    %522 = vmatprep.subr.mxu0 0.0
    %523 = vmatpush1.msra.mxu0 0.0
    %524 = vmatprep.subr.mxu0 0.0
    %525 = vmatpush1.msra.mxu0 0.0
    %526 = vmatprep.subr.mxu0 0.0
    %527 = vmatpush1.msra.mxu0 0.0
    %528 = vmatprep.subr.mxu0 0.0
    %529 = vmatpush1.msra.mxu0 0.0
    %530 = vmatprep.mubr.f32.mxu0 0.0
    %531 = vmatmul.mubr.f32.gmra.mrb[0].mxu0 %v461
    %v532 = vpop.f32.mrb[0].mxu0
    %v533 = vadd.f32 %v457, %v532
    %v534 = vpop.f32.mrb[0].mxu0
    %535 = vmatprep.mubr.f32.mxu0 0.0
    %536 = vmatmul.mubr.f32.gmra.mrb[0].mxu0 %v464
    %v537 = vpop.f32.mrb[0].mxu0
    %v538 = vadd.f32 %v457, %v537
    %v539 = vpop.f32.mrb[0].mxu0
    %540 = vdwg.mxu0
    %541 = vst [vmem:[%s106] sm:$0xff] %v533
    %542 = vst [vmem:[%s106 + $0x8] sm:$0xff] %v538
  $region41: #{smooth_conv_layer.3} parent=0 // pred_fallthru
    _
  %s543 = sld [smem:[#allocation4]]
  %s544 = smul.u32 2, %s543
  %p545 = scmp.lt.s32.totalorder %s544, 1
  %s546 = scalar_select %p545, %s544, 1
  %s547 = smul.addr %s546, 8
  %s548 = scalar_lea.vmem %s12, %s547
  // Predicated region
  $region42: #{smooth_conv_layer.3} parent=0 // pred_check
    _
  $region43: #{smooth_conv_layer.3} parent=0 // pred_check_branch
    %550 = sbr.rel (0) target = $region45
  $region44: #{smooth_conv_layer.3} parent=0 // pred_region
    %s551 = sld [smem:[#allocation4]]
    %s552 = smul.u32 2, %s551
  $region45: #{smooth_conv_layer.3} parent=0 // pred_fallthru
    _
  // Predicated region
  $region46: #{smooth_conv_layer.3} parent=0 // pred_check
    _
  $region47: #{smooth_conv_layer.3} parent=0 // pred_check_branch
    %554 = sbr.rel (0) target = $region49
  $region48: #{smooth_conv_layer.3} parent=0 // pred_region
    %s555 = sld [smem:[#allocation4]]
    %s556 = smul.u32 2, %s555
    %p557 = scmp.lt.s32.totalorder %s556, 1
    %s558 = scalar_select %p557, %s556, 1
    %s559 = smul.addr %s558, 8
    %s560 = scalar_lea.vmem %s12, %s559
  $region49: #{smooth_conv_layer.3} parent=0 // pred_fallthru
    _

// kernel: smooth_conv_layer.2
$region0: #{smooth_conv_layer.2}
  #allocation0 [shape = 'u32[]', space=smem, size = 0x4, offset = 0x4, fixed_abs, tag = 'smem constant byte address 0x4 - core index']
  #allocation1 [shape = 'u32[144,128]{1,0:T(1,128)}', space=vmem, size = 0x12000, scoped, tag = 'internal scratch']
  %s0 = inlined_call_operand.vmem [shape: f32[128,8], index: 0, kind: input, shape index: {}]
  %s1 = inlined_call_operand.vmem [shape: f32[128,128], index: 1, kind: input, shape index: {}]
  %s2 = inlined_call_operand.vmem [shape: f32[128,128], index: 2, kind: input, shape index: {}]
  %s3 = inlined_call_operand.vmem [shape: f32[8,32], index: 3, kind: input, shape index: {}]
  %s4 = inlined_call_operand.vmem [shape: f32[1,32], index: 4, kind: input, shape index: {}]
  %s5 = inlined_call_operand.vmem [shape: f32[32,32], index: 5, kind: input, shape index: {}]
  %s6 = inlined_call_operand.vmem [shape: f32[128,32], index: 6, kind: input, shape index: {}]
  %s7 = inlined_call_operand.vmem [shape: f32[128,32], index: 7, kind: input, shape index: {}]
  %s8 = inlined_call_operand.vmem [shape: f32[1,32], index: 8, kind: input, shape index: {}]
  %s9 = inlined_call_operand.vmem [shape: f32[32,32], index: 9, kind: input, shape index: {}]
  %s10 = inlined_call_operand.vmem [shape: f32[1,32], index: 10, kind: input, shape index: {}]
  %s11 = inlined_call_operand.vmem [shape: f32[32,128], index: 11, kind: input, shape index: {}]
  %s12 = inlined_call_operand.vmem [shape: f32[1,128], index: 12, kind: input, shape index: {}]
  %s13 = inlined_call_operand.vmem [shape: bf16[128,128], index: 13, kind: output, shape index: {}]
  %s14 = sld [smem:[#allocation0]]
  $region62: #{smooth_conv_layer.2} parent=0
    _
  %s16 = ssub.s32 1, %s14
  %s17 = scalar_select 0, %s16, %s14
  // Predicated region
  $region2: #{smooth_conv_layer.2} parent=0 // pred_check
    _
  $region3: #{smooth_conv_layer.2} parent=0 // pred_check_branch
    %19 = sbr.rel (0) target = $region5
  $region4: #{smooth_conv_layer.2} parent=0 // pred_region
    _
  $region5: #{smooth_conv_layer.2} parent=0 // pred_fallthru
    _
  // Predicated region
  $region6: #{smooth_conv_layer.2} parent=0 // pred_check
    _
  $region7: #{smooth_conv_layer.2} parent=0 // pred_check_branch
    %21 = sbr.rel (0) target = $region9
  $region8: #{smooth_conv_layer.2} parent=0 // pred_region
    _
  $region9: #{smooth_conv_layer.2} parent=0 // pred_fallthru
    _
  // Predicated region
  $region10: #{smooth_conv_layer.2} parent=0 // pred_check
    _
  $region11: #{smooth_conv_layer.2} parent=0 // pred_check_branch
    %23 = sbr.rel (0) target = $region13
  $region12: #{smooth_conv_layer.2} parent=0 // pred_region
    _
  $region13: #{smooth_conv_layer.2} parent=0 // pred_fallthru
    _
  // Predicated region
  $region14: #{smooth_conv_layer.2} parent=0 // pred_check
    _
  $region15: #{smooth_conv_layer.2} parent=0 // pred_check_branch
    %25 = sbr.rel (0) target = $region17
  $region16: #{smooth_conv_layer.2} parent=0 // pred_region
    _
  $region17: #{smooth_conv_layer.2} parent=0 // pred_fallthru
    _
  // Predicated region
  $region18: #{smooth_conv_layer.2} parent=0 // pred_check
    _
  $region19: #{smooth_conv_layer.2} parent=0 // pred_check_branch
    %27 = sbr.rel (0) target = $region21
  $region20: #{smooth_conv_layer.2} parent=0 // pred_region
    _
  $region21: #{smooth_conv_layer.2} parent=0 // pred_fallthru
    _
  // Predicated region
  $region22: #{smooth_conv_layer.2} parent=0 // pred_check
    _
  $region23: #{smooth_conv_layer.2} parent=0 // pred_check_branch
    %29 = sbr.rel (0) target = $region25
  $region24: #{smooth_conv_layer.2} parent=0 // pred_region
    _
  $region25: #{smooth_conv_layer.2} parent=0 // pred_fallthru
    _
  // Predicated region
  $region26: #{smooth_conv_layer.2} parent=0 // pred_check
    _
  $region27: #{smooth_conv_layer.2} parent=0 // pred_check_branch
    %31 = sbr.rel (0) target = $region29
  $region28: #{smooth_conv_layer.2} parent=0 // pred_region
    _
  $region29: #{smooth_conv_layer.2} parent=0 // pred_fallthru
    _
  // Predicated region
  $region30: #{smooth_conv_layer.2} parent=0 // pred_check
    _
  $region31: #{smooth_conv_layer.2} parent=0 // pred_check_branch
    %33 = sbr.rel (0) target = $region33
  $region32: #{smooth_conv_layer.2} parent=0 // pred_region
    _
  $region33: #{smooth_conv_layer.2} parent=0 // pred_fallthru
    _
  // Predicated region
  $region34: #{smooth_conv_layer.2} parent=0 // pred_check
    _
  $region35: #{smooth_conv_layer.2} parent=0 // pred_check_branch
    %35 = sbr.rel (0) target = $region37
  $region36: #{smooth_conv_layer.2} parent=0 // pred_region
    _
  $region37: #{smooth_conv_layer.2} parent=0 // pred_fallthru
    _
  // Predicated region
  $region38: #{smooth_conv_layer.2} parent=0 // pred_check
    _
  $region39: #{smooth_conv_layer.2} parent=0 // pred_check_branch
    %37 = sbr.rel (0) target = $region41
  $region40: #{smooth_conv_layer.2} parent=0 // pred_region
    _
  $region41: #{smooth_conv_layer.2} parent=0 // pred_fallthru
    _
  // Predicated region
  $region42: #{smooth_conv_layer.2} parent=0 // pred_check
    _
  $region43: #{smooth_conv_layer.2} parent=0 // pred_check_branch
    %39 = sbr.rel (0) target = $region45
  $region44: #{smooth_conv_layer.2} parent=0 // pred_region
    _
  $region45: #{smooth_conv_layer.2} parent=0 // pred_fallthru
    _
  // Predicated region
  $region46: #{smooth_conv_layer.2} parent=0 // pred_check
    _
  $region47: #{smooth_conv_layer.2} parent=0 // pred_check_branch
    %41 = sbr.rel (0) target = $region49
  $region48: #{smooth_conv_layer.2} parent=0 // pred_region
    _
  $region49: #{smooth_conv_layer.2} parent=0 // pred_fallthru
    _
  // Predicated region
  $region50: #{smooth_conv_layer.2} parent=0 // pred_check
    _
  $region51: #{smooth_conv_layer.2} parent=0 // pred_check_branch
    %43 = sbr.rel (0) target = $region53
  $region52: #{smooth_conv_layer.2} parent=0 // pred_region
    _
  $region53: #{smooth_conv_layer.2} parent=0 // pred_fallthru
    _
  %v44 = vld [vmem:[%s1] sm:$0xff]
  %v45 = vld [vmem:[%s1 + $0x8] sm:$0xff]
  %v46 = vld [vmem:[%s1 + $0x10] sm:$0xff]
  %v47 = vld [vmem:[%s1 + $0x18] sm:$0xff]
  %v48 = vld [vmem:[%s1 + $0x20] sm:$0xff]
  %v49 = vld [vmem:[%s1 + $0x28] sm:$0xff]
  %v50 = vld [vmem:[%s1 + $0x30] sm:$0xff]
  %v51 = vld [vmem:[%s1 + $0x38] sm:$0xff]
  %v52 = vld [vmem:[%s1 + $0x40] sm:$0xff]
  %v53 = vld [vmem:[%s1 + $0x48] sm:$0xff]
  %v54 = vld [vmem:[%s1 + $0x50] sm:$0xff]
  %v55 = vld [vmem:[%s1 + $0x58] sm:$0xff]
  %v56 = vld [vmem:[%s1 + $0x60] sm:$0xff]
  %v57 = vld [vmem:[%s1 + $0x68] sm:$0xff]
  %v58 = vld [vmem:[%s1 + $0x70] sm:$0xff]
  %v59 = vld [vmem:[%s1 + $0x78] sm:$0xff]
  %v60 = vld [vmem:[%s0] sm:$0xff]
  %v61 = vld [vmem:[%s0 + $0x8] sm:$0xff]
  %v62 = vld [vmem:[%s0 + $0x10] sm:$0xff]
  %v63 = vld [vmem:[%s0 + $0x18] sm:$0xff]
  %v64 = vld [vmem:[%s0 + $0x20] sm:$0xff]
  %v65 = vld [vmem:[%s0 + $0x28] sm:$0xff]
  %v66 = vld [vmem:[%s0 + $0x30] sm:$0xff]
  %v67 = vld [vmem:[%s0 + $0x38] sm:$0xff]
  %v68 = vld [vmem:[%s0 + $0x40] sm:$0xff]
  %v69 = vld [vmem:[%s0 + $0x48] sm:$0xff]
  %v70 = vld [vmem:[%s0 + $0x50] sm:$0xff]
  %v71 = vld [vmem:[%s0 + $0x58] sm:$0xff]
  %v72 = vld [vmem:[%s0 + $0x60] sm:$0xff]
  %v73 = vld [vmem:[%s0 + $0x68] sm:$0xff]
  %v74 = vld [vmem:[%s0 + $0x70] sm:$0xff]
  %v75 = vld [vmem:[%s0 + $0x78] sm:$0xff]
  %v76 = vld [vmem:[%s3] sm:$0xff]
  %v77 = vld [vmem:[%s4] sm:$0x1]
  %v79 = vlaneseq
  %v80 = vshrl.u32 %v79, 7
  %v81 = vsub.s32 0, %v80
  %v82 = vrot.slane %v77, %v81
  %vm84 = vcmask 64512
  %v86 = vsel %vm84, %v60, 0
  %v89 = vsel %vm84, %v61, 0
  %v92 = vsel %vm84, %v62, 0
  %v95 = vsel %vm84, %v63, 0
  %v98 = vsel %vm84, %v64, 0
  %v101 = vsel %vm84, %v65, 0
  %v104 = vsel %vm84, %v66, 0
  %v107 = vsel %vm84, %v67, 0
  %v110 = vsel %vm84, %v68, 0
  %v113 = vsel %vm84, %v69, 0
  %v116 = vsel %vm84, %v70, 0
  %v119 = vsel %vm84, %v71, 0
  %v122 = vsel %vm84, %v72, 0
  %v125 = vsel %vm84, %v73, 0
  %v128 = vsel %vm84, %v74, 0
  %v131 = vsel %vm84, %v75, 0
  %133 = vmatprep.subr.mxu0 0.0
  %134 = vmatpush1.msra.mxu0 %v76
  %135 = vmatprep.subr.mxu0 0.0
  %136 = vmatpush1.msra.mxu0 0.0
  %137 = vmatprep.subr.mxu0 0.0
  %138 = vmatpush1.msra.mxu0 0.0
  %139 = vmatprep.subr.mxu0 0.0
  %140 = vmatpush1.msra.mxu0 0.0
  %141 = vmatprep.subr.mxu0 0.0
  %142 = vmatpush1.msra.mxu0 0.0
  %143 = vmatprep.subr.mxu0 0.0
  %144 = vmatpush1.msra.mxu0 0.0
  %145 = vmatprep.subr.mxu0 0.0
  %146 = vmatpush1.msra.mxu0 0.0
  %147 = vmatprep.subr.mxu0 0.0
  %148 = vmatpush1.msra.mxu0 0.0
  %149 = vmatprep.subr.mxu0 0.0
  %150 = vmatpush1.msra.mxu0 0.0
  %151 = vmatprep.subr.mxu0 0.0
  %152 = vmatpush1.msra.mxu0 0.0
  %153 = vmatprep.subr.mxu0 0.0
  %154 = vmatpush1.msra.mxu0 0.0
  %155 = vmatprep.subr.mxu0 0.0
  %156 = vmatpush1.msra.mxu0 0.0
  %157 = vmatprep.subr.mxu0 0.0
  %158 = vmatpush1.msra.mxu0 0.0
  %159 = vmatprep.subr.mxu0 0.0
  %160 = vmatpush1.msra.mxu0 0.0
  %161 = vmatprep.subr.mxu0 0.0
  %162 = vmatpush1.msra.mxu0 0.0
  %163 = vmatprep.subr.mxu0 0.0
  %164 = vmatpush1.msra.mxu0 0.0
  %165 = vmatprep.subr.mxu0 0.0
  %166 = vmatpush1.msra.mxu0 0.0
  %167 = vmatprep.subr.mxu0 0.0
  %168 = vmatpush1.msra.mxu0 0.0
  %169 = vmatprep.subr.mxu0 0.0
  %170 = vmatpush1.msra.mxu0 0.0
  %171 = vmatprep.subr.mxu0 0.0
  %172 = vmatpush1.msra.mxu0 0.0
  %173 = vmatprep.subr.mxu0 0.0
  %174 = vmatpush1.msra.mxu0 0.0
  %175 = vmatprep.subr.mxu0 0.0
  %176 = vmatpush1.msra.mxu0 0.0
  %177 = vmatprep.subr.mxu0 0.0
  %178 = vmatpush1.msra.mxu0 0.0
  %179 = vmatprep.subr.mxu0 0.0
  %180 = vmatpush1.msra.mxu0 0.0
  %181 = vmatprep.subr.mxu0 0.0
  %182 = vmatpush1.msra.mxu0 0.0
  %183 = vmatprep.subr.mxu0 0.0
  %184 = vmatpush1.msra.mxu0 0.0
  %185 = vmatprep.subr.mxu0 0.0
  %186 = vmatpush1.msra.mxu0 0.0
  %187 = vmatprep.subr.mxu0 0.0
  %188 = vmatpush1.msra.mxu0 0.0
  %189 = vmatprep.subr.mxu0 0.0
  %190 = vmatpush1.msra.mxu0 0.0
  %191 = vmatprep.subr.mxu0 0.0
  %192 = vmatpush1.msra.mxu0 0.0
  %193 = vmatprep.subr.mxu0 0.0
  %194 = vmatpush1.msra.mxu0 0.0
  %195 = vmatprep.subr.mxu0 0.0
  %196 = vmatpush1.msra.mxu0 0.0
  %197 = vmatprep.mubr.f32.mxu0 0.0
  %198 = vmatmul.mubr.f32.gmra.mrb[0].mxu0 %v86
  %v199 = vpop.f32.mrb[0].mxu0
  %v200 = vadd.f32 %v82, %v199
  %v201 = vpop.f32.mrb[0].mxu0
  %202 = vmatprep.mubr.f32.mxu0 0.0
  %203 = vmatmul.mubr.f32.gmra.mrb[0].mxu0 %v89
  %v204 = vpop.f32.mrb[0].mxu0
  %v205 = vadd.f32 %v82, %v204
  %v206 = vpop.f32.mrb[0].mxu0
  %207 = vmatprep.mubr.f32.mxu0 0.0
  %208 = vmatmul.mubr.f32.gmra.mrb[0].mxu0 %v92
  %v209 = vpop.f32.mrb[0].mxu0
  %v210 = vadd.f32 %v82, %v209
  %v211 = vpop.f32.mrb[0].mxu0
  %212 = vmatprep.mubr.f32.mxu0 0.0
  %213 = vmatmul.mubr.f32.gmra.mrb[0].mxu0 %v95
  %v214 = vpop.f32.mrb[0].mxu0
  %v215 = vadd.f32 %v82, %v214
  %v216 = vpop.f32.mrb[0].mxu0
  %217 = vmatprep.mubr.f32.mxu0 0.0
  %218 = vmatmul.mubr.f32.gmra.mrb[0].mxu0 %v98
  %v219 = vpop.f32.mrb[0].mxu0
  %v220 = vadd.f32 %v82, %v219
  %v221 = vpop.f32.mrb[0].mxu0
  %222 = vmatprep.mubr.f32.mxu0 0.0
  %223 = vmatmul.mubr.f32.gmra.mrb[0].mxu0 %v101
  %v224 = vpop.f32.mrb[0].mxu0
  %v225 = vadd.f32 %v82, %v224
  %v226 = vpop.f32.mrb[0].mxu0
  %227 = vmatprep.mubr.f32.mxu0 0.0
  %228 = vmatmul.mubr.f32.gmra.mrb[0].mxu0 %v104
  %v229 = vpop.f32.mrb[0].mxu0
  %v230 = vadd.f32 %v82, %v229
  %v231 = vpop.f32.mrb[0].mxu0
  %232 = vmatprep.mubr.f32.mxu0 0.0
  %233 = vmatmul.mubr.f32.gmra.mrb[0].mxu0 %v107
  %v234 = vpop.f32.mrb[0].mxu0
  %v235 = vadd.f32 %v82, %v234
  %v236 = vpop.f32.mrb[0].mxu0
  %237 = vmatprep.mubr.f32.mxu0 0.0
  %238 = vmatmul.mubr.f32.gmra.mrb[0].mxu0 %v110
  %v239 = vpop.f32.mrb[0].mxu0
  %v240 = vadd.f32 %v82, %v239
  %v241 = vpop.f32.mrb[0].mxu0
  %242 = vmatprep.mubr.f32.mxu0 0.0
  %243 = vmatmul.mubr.f32.gmra.mrb[0].mxu0 %v113
  %v244 = vpop.f32.mrb[0].mxu0
  %v245 = vadd.f32 %v82, %v244
  %v246 = vpop.f32.mrb[0].mxu0
  %247 = vmatprep.mubr.f32.mxu0 0.0
  %248 = vmatmul.mubr.f32.gmra.mrb[0].mxu0 %v116
  %v249 = vpop.f32.mrb[0].mxu0
  %v250 = vadd.f32 %v82, %v249
  %v251 = vpop.f32.mrb[0].mxu0
  %252 = vmatprep.mubr.f32.mxu0 0.0
  %253 = vmatmul.mubr.f32.gmra.mrb[0].mxu0 %v119
  %v254 = vpop.f32.mrb[0].mxu0
  %v255 = vadd.f32 %v82, %v254
  %v256 = vpop.f32.mrb[0].mxu0
  %257 = vmatprep.mubr.f32.mxu0 0.0
  %258 = vmatmul.mubr.f32.gmra.mrb[0].mxu0 %v122
  %v259 = vpop.f32.mrb[0].mxu0
  %v260 = vadd.f32 %v82, %v259
  %v261 = vpop.f32.mrb[0].mxu0
  %262 = vmatprep.mubr.f32.mxu0 0.0
  %263 = vmatmul.mubr.f32.gmra.mrb[0].mxu0 %v125
  %v264 = vpop.f32.mrb[0].mxu0
  %v265 = vadd.f32 %v82, %v264
  %v266 = vpop.f32.mrb[0].mxu0
  %267 = vmatprep.mubr.f32.mxu0 0.0
  %268 = vmatmul.mubr.f32.gmra.mrb[0].mxu0 %v128
  %v269 = vpop.f32.mrb[0].mxu0
  %v270 = vadd.f32 %v82, %v269
  %v271 = vpop.f32.mrb[0].mxu0
  %272 = vmatprep.mubr.f32.mxu0 0.0
  %273 = vmatmul.mubr.f32.gmra.mrb[0].mxu0 %v131
  %v274 = vpop.f32.mrb[0].mxu0
  %v275 = vadd.f32 %v82, %v274
  %v276 = vpop.f32.mrb[0].mxu0
  %277 = vdwg.mxu0
  %v278 = vmax.f32 %v200, 0.0
  %v279 = vmax.f32 %v205, 0.0
  %v280 = vmax.f32 %v210, 0.0
  %v281 = vmax.f32 %v215, 0.0
  %v282 = vmax.f32 %v220, 0.0
  %v283 = vmax.f32 %v225, 0.0
  %v284 = vmax.f32 %v230, 0.0
  %v285 = vmax.f32 %v235, 0.0
  %v286 = vmax.f32 %v240, 0.0
  %v287 = vmax.f32 %v245, 0.0
  %v288 = vmax.f32 %v250, 0.0
  %v289 = vmax.f32 %v255, 0.0
  %v290 = vmax.f32 %v260, 0.0
  %v291 = vmax.f32 %v265, 0.0
  %v292 = vmax.f32 %v270, 0.0
  %v293 = vmax.f32 %v275, 0.0
  %v294 = vld [vmem:[%s5] sm:$0xff]
  %v295 = vld [vmem:[%s5 + $0x8] sm:$0xff]
  %v296 = vld [vmem:[%s5 + $0x10] sm:$0xff]
  %v297 = vld [vmem:[%s5 + $0x18] sm:$0xff]
  %v298 = vld [vmem:[%s6] sm:$0xff]
  %v299 = vld [vmem:[%s6 + $0x8] sm:$0xff]
  %v300 = vld [vmem:[%s6 + $0x10] sm:$0xff]
  %v301 = vld [vmem:[%s6 + $0x18] sm:$0xff]
  %v302 = vld [vmem:[%s6 + $0x20] sm:$0xff]
  %v303 = vld [vmem:[%s6 + $0x28] sm:$0xff]
  %v304 = vld [vmem:[%s6 + $0x30] sm:$0xff]
  %v305 = vld [vmem:[%s6 + $0x38] sm:$0xff]
  %v306 = vld [vmem:[%s6 + $0x40] sm:$0xff]
  %v307 = vld [vmem:[%s6 + $0x48] sm:$0xff]
  %v308 = vld [vmem:[%s6 + $0x50] sm:$0xff]
  %v309 = vld [vmem:[%s6 + $0x58] sm:$0xff]
  %v310 = vld [vmem:[%s6 + $0x60] sm:$0xff]
  %v311 = vld [vmem:[%s6 + $0x68] sm:$0xff]
  %v312 = vld [vmem:[%s6 + $0x70] sm:$0xff]
  %v313 = vld [vmem:[%s6 + $0x78] sm:$0xff]
  %314 = vmatprep.subr.mxu0 0.0
  %315 = vmatpush1.msra.mxu0 %v298
  %316 = vmatprep.subr.mxu0 0.0
  %317 = vmatpush1.msra.mxu0 %v299
  %318 = vmatprep.subr.mxu0 0.0
  %319 = vmatpush1.msra.mxu0 %v300
  %320 = vmatprep.subr.mxu0 0.0
  %321 = vmatpush1.msra.mxu0 %v301
  %322 = vmatprep.subr.mxu0 0.0
  %323 = vmatpush1.msra.mxu0 %v302
  %324 = vmatprep.subr.mxu0 0.0
  %325 = vmatpush1.msra.mxu0 %v303
  %326 = vmatprep.subr.mxu0 0.0
  %327 = vmatpush1.msra.mxu0 %v304
  %328 = vmatprep.subr.mxu0 0.0
  %329 = vmatpush1.msra.mxu0 %v305
  %330 = vmatprep.subr.mxu0 0.0
  %331 = vmatpush1.msra.mxu0 %v306
  %332 = vmatprep.subr.mxu0 0.0
  %333 = vmatpush1.msra.mxu0 %v307
  %334 = vmatprep.subr.mxu0 0.0
  %335 = vmatpush1.msra.mxu0 %v308
  %336 = vmatprep.subr.mxu0 0.0
  %337 = vmatpush1.msra.mxu0 %v309
  %338 = vmatprep.subr.mxu0 0.0
  %339 = vmatpush1.msra.mxu0 %v310
  %340 = vmatprep.subr.mxu0 0.0
  %341 = vmatpush1.msra.mxu0 %v311
  %342 = vmatprep.subr.mxu0 0.0
  %343 = vmatpush1.msra.mxu0 %v312
  %344 = vmatprep.subr.mxu0 0.0
  %345 = vmatpush1.msra.mxu0 %v313
  %346 = vmatprep.subr.mxu0 0.0
  %347 = vmatpush1.msra.mxu0 0.0
  %348 = vmatprep.subr.mxu0 0.0
  %349 = vmatpush1.msra.mxu0 0.0
  %350 = vmatprep.subr.mxu0 0.0
  %351 = vmatpush1.msra.mxu0 0.0
  %352 = vmatprep.subr.mxu0 0.0
  %353 = vmatpush1.msra.mxu0 0.0
  %354 = vmatprep.subr.mxu0 0.0
  %355 = vmatpush1.msra.mxu0 0.0
  %356 = vmatprep.subr.mxu0 0.0
  %357 = vmatpush1.msra.mxu0 0.0
  %358 = vmatprep.subr.mxu0 0.0
  %359 = vmatpush1.msra.mxu0 0.0
  %360 = vmatprep.subr.mxu0 0.0
  %361 = vmatpush1.msra.mxu0 0.0
  %362 = vmatprep.subr.mxu0 0.0
  %363 = vmatpush1.msra.mxu0 0.0
  %364 = vmatprep.subr.mxu0 0.0
  %365 = vmatpush1.msra.mxu0 0.0
  %366 = vmatprep.subr.mxu0 0.0
  %367 = vmatpush1.msra.mxu0 0.0
  %368 = vmatprep.subr.mxu0 0.0
  %369 = vmatpush1.msra.mxu0 0.0
  %370 = vmatprep.subr.mxu0 0.0
  %371 = vmatpush1.msra.mxu0 0.0
  %372 = vmatprep.subr.mxu0 0.0
  %373 = vmatpush1.msra.mxu0 0.0
  %374 = vmatprep.subr.mxu0 0.0
  %375 = vmatpush1.msra.mxu0 0.0
  %376 = vmatprep.subr.mxu0 0.0
  %377 = vmatpush1.msra.mxu0 0.0
  %378 = vmatprep.mubr.f32.mxu0 0.0
  %379 = vmatmul.mubr.f32.gmra.mrb[0].mxu0 %v44
  %v380 = vpop.f32.mrb[0].mxu0
  %v381 = vadd.f32 0.0, %v380
  %v382 = vpop.f32.mrb[0].mxu0
  %383 = vmatprep.mubr.f32.mxu0 0.0
  %384 = vmatmul.mubr.f32.gmra.mrb[0].mxu0 %v45
  %v385 = vpop.f32.mrb[0].mxu0
  %v386 = vadd.f32 0.0, %v385
  %v387 = vpop.f32.mrb[0].mxu0
  %388 = vmatprep.mubr.f32.mxu0 0.0
  %389 = vmatmul.mubr.f32.gmra.mrb[0].mxu0 %v46
  %v390 = vpop.f32.mrb[0].mxu0
  %v391 = vadd.f32 0.0, %v390
  %v392 = vpop.f32.mrb[0].mxu0
  %393 = vmatprep.mubr.f32.mxu0 0.0
  %394 = vmatmul.mubr.f32.gmra.mrb[0].mxu0 %v47
  %v395 = vpop.f32.mrb[0].mxu0
  %v396 = vadd.f32 0.0, %v395
  %v397 = vpop.f32.mrb[0].mxu0
  %398 = vmatprep.mubr.f32.mxu0 0.0
  %399 = vmatmul.mubr.f32.gmra.mrb[0].mxu0 %v48
  %v400 = vpop.f32.mrb[0].mxu0
  %v401 = vadd.f32 0.0, %v400
  %v402 = vpop.f32.mrb[0].mxu0
  %403 = vmatprep.mubr.f32.mxu0 0.0
  %404 = vmatmul.mubr.f32.gmra.mrb[0].mxu0 %v49
  %v405 = vpop.f32.mrb[0].mxu0
  %v406 = vadd.f32 0.0, %v405
  %v407 = vpop.f32.mrb[0].mxu0
  %408 = vmatprep.mubr.f32.mxu0 0.0
  %409 = vmatmul.mubr.f32.gmra.mrb[0].mxu0 %v50
  %v410 = vpop.f32.mrb[0].mxu0
  %v411 = vadd.f32 0.0, %v410
  %v412 = vpop.f32.mrb[0].mxu0
  %413 = vmatprep.mubr.f32.mxu0 0.0
  %414 = vmatmul.mubr.f32.gmra.mrb[0].mxu0 %v51
  %v415 = vpop.f32.mrb[0].mxu0
  %v416 = vadd.f32 0.0, %v415
  %v417 = vpop.f32.mrb[0].mxu0
  %418 = vmatprep.mubr.f32.mxu0 0.0
  %419 = vmatmul.mubr.f32.gmra.mrb[0].mxu0 %v52
  %v420 = vpop.f32.mrb[0].mxu0
  %v421 = vadd.f32 0.0, %v420
  %v422 = vpop.f32.mrb[0].mxu0
  %423 = vmatprep.mubr.f32.mxu0 0.0
  %424 = vmatmul.mubr.f32.gmra.mrb[0].mxu0 %v53
  %v425 = vpop.f32.mrb[0].mxu0
  %v426 = vadd.f32 0.0, %v425
  %v427 = vpop.f32.mrb[0].mxu0
  %428 = vmatprep.mubr.f32.mxu0 0.0
  %429 = vmatmul.mubr.f32.gmra.mrb[0].mxu0 %v54
  %v430 = vpop.f32.mrb[0].mxu0
  %v431 = vadd.f32 0.0, %v430
  %v432 = vpop.f32.mrb[0].mxu0
  %433 = vmatprep.mubr.f32.mxu0 0.0
  %434 = vmatmul.mubr.f32.gmra.mrb[0].mxu0 %v55
  %v435 = vpop.f32.mrb[0].mxu0
  %v436 = vadd.f32 0.0, %v435
  %v437 = vpop.f32.mrb[0].mxu0
  %438 = vmatprep.mubr.f32.mxu0 0.0
  %439 = vmatmul.mubr.f32.gmra.mrb[0].mxu0 %v56
  %v440 = vpop.f32.mrb[0].mxu0
  %v441 = vadd.f32 0.0, %v440
  %v442 = vpop.f32.mrb[0].mxu0
  %443 = vmatprep.mubr.f32.mxu0 0.0
  %444 = vmatmul.mubr.f32.gmra.mrb[0].mxu0 %v57
  %v445 = vpop.f32.mrb[0].mxu0
  %v446 = vadd.f32 0.0, %v445
  %v447 = vpop.f32.mrb[0].mxu0
  %448 = vmatprep.mubr.f32.mxu0 0.0
  %449 = vmatmul.mubr.f32.gmra.mrb[0].mxu0 %v58
  %v450 = vpop.f32.mrb[0].mxu0
  %v451 = vadd.f32 0.0, %v450
  %v452 = vpop.f32.mrb[0].mxu0
  %453 = vmatprep.mubr.f32.mxu0 0.0
  %454 = vmatmul.mubr.f32.gmra.mrb[0].mxu0 %v59
  %v455 = vpop.f32.mrb[0].mxu0
  %v456 = vadd.f32 0.0, %v455
  %v457 = vpop.f32.mrb[0].mxu0
  %458 = vdwg.mxu0
  %vm459 = vcmask 261120
  %v461 = vsel %vm459, %v278, 0
  %v464 = vsel %vm459, %v279, 0
  %v467 = vsel %vm459, %v280, 0
  %v470 = vsel %vm459, %v281, 0
  %v473 = vsel %vm459, %v282, 0
  %v476 = vsel %vm459, %v283, 0
  %v479 = vsel %vm459, %v284, 0
  %v482 = vsel %vm459, %v285, 0
  %v485 = vsel %vm459, %v286, 0
  %v488 = vsel %vm459, %v287, 0
  %v491 = vsel %vm459, %v288, 0
  %v494 = vsel %vm459, %v289, 0
  %v497 = vsel %vm459, %v290, 0
  %v500 = vsel %vm459, %v291, 0
  %v503 = vsel %vm459, %v292, 0
  %v506 = vsel %vm459, %v293, 0
  %508 = vmatprep.subr.mxu0 0.0
  %509 = vmatpush1.msra.mxu0 %v294
  %510 = vmatprep.subr.mxu0 0.0
  %511 = vmatpush1.msra.mxu0 %v295
  %512 = vmatprep.subr.mxu0 0.0
  %513 = vmatpush1.msra.mxu0 %v296
  %514 = vmatprep.subr.mxu0 0.0
  %515 = vmatpush1.msra.mxu0 %v297
  %516 = vmatprep.subr.mxu0 0.0
  %517 = vmatpush1.msra.mxu0 0.0
  %518 = vmatprep.subr.mxu0 0.0
  %519 = vmatpush1.msra.mxu0 0.0
  %520 = vmatprep.subr.mxu0 0.0
  %521 = vmatpush1.msra.mxu0 0.0
  %522 = vmatprep.subr.mxu0 0.0
  %523 = vmatpush1.msra.mxu0 0.0
  %524 = vmatprep.subr.mxu0 0.0
  %525 = vmatpush1.msra.mxu0 0.0
  %526 = vmatprep.subr.mxu0 0.0
  %527 = vmatpush1.msra.mxu0 0.0
  %528 = vmatprep.subr.mxu0 0.0
  %529 = vmatpush1.msra.mxu0 0.0
  %530 = vmatprep.subr.mxu0 0.0
  %531 = vmatpush1.msra.mxu0 0.0
  %532 = vmatprep.subr.mxu0 0.0
  %533 = vmatpush1.msra.mxu0 0.0
  %534 = vmatprep.subr.mxu0 0.0
  %535 = vmatpush1.msra.mxu0 0.0
  %536 = vmatprep.subr.mxu0 0.0
  %537 = vmatpush1.msra.mxu0 0.0
  %538 = vmatprep.subr.mxu0 0.0
  %539 = vmatpush1.msra.mxu0 0.0
  %540 = vmatprep.subr.mxu0 0.0
  %541 = vmatpush1.msra.mxu0 0.0
  %542 = vmatprep.subr.mxu0 0.0
  %543 = vmatpush1.msra.mxu0 0.0
  %544 = vmatprep.subr.mxu0 0.0
  %545 = vmatpush1.msra.mxu0 0.0
  %546 = vmatprep.subr.mxu0 0.0
  %547 = vmatpush1.msra.mxu0 0.0
  %548 = vmatprep.subr.mxu0 0.0
  %549 = vmatpush1.msra.mxu0 0.0
  %550 = vmatprep.subr.mxu0 0.0
  %551 = vmatpush1.msra.mxu0 0.0
  %552 = vmatprep.subr.mxu0 0.0
  %553 = vmatpush1.msra.mxu0 0.0
  %554 = vmatprep.subr.mxu0 0.0
  %555 = vmatpush1.msra.mxu0 0.0
  %556 = vmatprep.subr.mxu0 0.0
  %557 = vmatpush1.msra.mxu0 0.0
  %558 = vmatprep.subr.mxu0 0.0
  %559 = vmatpush1.msra.mxu0 0.0
  %560 = vmatprep.subr.mxu0 0.0
  %561 = vmatpush1.msra.mxu0 0.0
  %562 = vmatprep.subr.mxu0 0.0
  %563 = vmatpush1.msra.mxu0 0.0
  %564 = vmatprep.subr.mxu0 0.0
  %565 = vmatpush1.msra.mxu0 0.0
  %566 = vmatprep.subr.mxu0 0.0
  %567 = vmatpush1.msra.mxu0 0.0
  %568 = vmatprep.subr.mxu0 0.0
  %569 = vmatpush1.msra.mxu0 0.0
  %570 = vmatprep.subr.mxu0 0.0
  %571 = vmatpush1.msra.mxu0 0.0
  %572 = vmatprep.mubr.f32.mxu0 0.0
  %573 = vmatmul.mubr.f32.gmra.mrb[0].mxu0 %v461
  %v574 = vpop.f32.mrb[0].mxu0
  %v575 = vadd.f32 %v381, %v574
  %v576 = vpop.f32.mrb[0].mxu0
  %577 = vmatprep.mubr.f32.mxu0 0.0
  %578 = vmatmul.mubr.f32.gmra.mrb[0].mxu0 %v464
  %v579 = vpop.f32.mrb[0].mxu0
  %v580 = vadd.f32 %v386, %v579
  %v581 = vpop.f32.mrb[0].mxu0
  %582 = vmatprep.mubr.f32.mxu0 0.0
  %583 = vmatmul.mubr.f32.gmra.mrb[0].mxu0 %v467
  %v584 = vpop.f32.mrb[0].mxu0
  %v585 = vadd.f32 %v391, %v584
  %v586 = vpop.f32.mrb[0].mxu0
  %587 = vmatprep.mubr.f32.mxu0 0.0
  %588 = vmatmul.mubr.f32.gmra.mrb[0].mxu0 %v470
  %v589 = vpop.f32.mrb[0].mxu0
  %v590 = vadd.f32 %v396, %v589
  %v591 = vpop.f32.mrb[0].mxu0
  %592 = vmatprep.mubr.f32.mxu0 0.0
  %593 = vmatmul.mubr.f32.gmra.mrb[0].mxu0 %v473
  %v594 = vpop.f32.mrb[0].mxu0
  %v595 = vadd.f32 %v401, %v594
  %v596 = vpop.f32.mrb[0].mxu0
  %597 = vmatprep.mubr.f32.mxu0 0.0
  %598 = vmatmul.mubr.f32.gmra.mrb[0].mxu0 %v476
  %v599 = vpop.f32.mrb[0].mxu0
  %v600 = vadd.f32 %v406, %v599
  %v601 = vpop.f32.mrb[0].mxu0
  %602 = vmatprep.mubr.f32.mxu0 0.0
  %603 = vmatmul.mubr.f32.gmra.mrb[0].mxu0 %v479
  %v604 = vpop.f32.mrb[0].mxu0
  %v605 = vadd.f32 %v411, %v604
  %v606 = vpop.f32.mrb[0].mxu0
  %607 = vmatprep.mubr.f32.mxu0 0.0
  %608 = vmatmul.mubr.f32.gmra.mrb[0].mxu0 %v482
  %v609 = vpop.f32.mrb[0].mxu0
  %v610 = vadd.f32 %v416, %v609
  %v611 = vpop.f32.mrb[0].mxu0
  %612 = vmatprep.mubr.f32.mxu0 0.0
  %613 = vmatmul.mubr.f32.gmra.mrb[0].mxu0 %v485
  %v614 = vpop.f32.mrb[0].mxu0
  %v615 = vadd.f32 %v421, %v614
  %v616 = vpop.f32.mrb[0].mxu0
  %617 = vmatprep.mubr.f32.mxu0 0.0
  %618 = vmatmul.mubr.f32.gmra.mrb[0].mxu0 %v488
  %v619 = vpop.f32.mrb[0].mxu0
  %v620 = vadd.f32 %v426, %v619
  %v621 = vpop.f32.mrb[0].mxu0
  %622 = vmatprep.mubr.f32.mxu0 0.0
  %623 = vmatmul.mubr.f32.gmra.mrb[0].mxu0 %v491
  %v624 = vpop.f32.mrb[0].mxu0
  %v625 = vadd.f32 %v431, %v624
  %v626 = vpop.f32.mrb[0].mxu0
  %627 = vmatprep.mubr.f32.mxu0 0.0
  %628 = vmatmul.mubr.f32.gmra.mrb[0].mxu0 %v494
  %v629 = vpop.f32.mrb[0].mxu0
  %v630 = vadd.f32 %v436, %v629
  %v631 = vpop.f32.mrb[0].mxu0
  %632 = vmatprep.mubr.f32.mxu0 0.0
  %633 = vmatmul.mubr.f32.gmra.mrb[0].mxu0 %v497
  %v634 = vpop.f32.mrb[0].mxu0
  %v635 = vadd.f32 %v441, %v634
  %v636 = vpop.f32.mrb[0].mxu0
  %637 = vmatprep.mubr.f32.mxu0 0.0
  %638 = vmatmul.mubr.f32.gmra.mrb[0].mxu0 %v500
  %v639 = vpop.f32.mrb[0].mxu0
  %v640 = vadd.f32 %v446, %v639
  %v641 = vpop.f32.mrb[0].mxu0
  %642 = vmatprep.mubr.f32.mxu0 0.0
  %643 = vmatmul.mubr.f32.gmra.mrb[0].mxu0 %v503
  %v644 = vpop.f32.mrb[0].mxu0
  %v645 = vadd.f32 %v451, %v644
  %v646 = vpop.f32.mrb[0].mxu0
  %647 = vmatprep.mubr.f32.mxu0 0.0
  %648 = vmatmul.mubr.f32.gmra.mrb[0].mxu0 %v506
  %v649 = vpop.f32.mrb[0].mxu0
  %v650 = vadd.f32 %v456, %v649
  %v651 = vpop.f32.mrb[0].mxu0
  %652 = vdwg.mxu0
  %v653 = vld [vmem:[%s2] sm:$0xff]
  %v654 = vld [vmem:[%s2 + $0x8] sm:$0xff]
  %v655 = vld [vmem:[%s2 + $0x10] sm:$0xff]
  %v656 = vld [vmem:[%s2 + $0x18] sm:$0xff]
  %v657 = vld [vmem:[%s2 + $0x20] sm:$0xff]
  %v658 = vld [vmem:[%s2 + $0x28] sm:$0xff]
  %v659 = vld [vmem:[%s2 + $0x30] sm:$0xff]
  %v660 = vld [vmem:[%s2 + $0x38] sm:$0xff]
  %v661 = vld [vmem:[%s2 + $0x40] sm:$0xff]
  %v662 = vld [vmem:[%s2 + $0x48] sm:$0xff]
  %v663 = vld [vmem:[%s2 + $0x50] sm:$0xff]
  %v664 = vld [vmem:[%s2 + $0x58] sm:$0xff]
  %v665 = vld [vmem:[%s2 + $0x60] sm:$0xff]
  %v666 = vld [vmem:[%s2 + $0x68] sm:$0xff]
  %v667 = vld [vmem:[%s2 + $0x70] sm:$0xff]
  %v668 = vld [vmem:[%s2 + $0x78] sm:$0xff]
  %v669 = vld [vmem:[%s7] sm:$0xff]
  %v670 = vld [vmem:[%s7 + $0x8] sm:$0xff]
  %v671 = vld [vmem:[%s7 + $0x10] sm:$0xff]
  %v672 = vld [vmem:[%s7 + $0x18] sm:$0xff]
  %v673 = vld [vmem:[%s7 + $0x20] sm:$0xff]
  %v674 = vld [vmem:[%s7 + $0x28] sm:$0xff]
  %v675 = vld [vmem:[%s7 + $0x30] sm:$0xff]
  %v676 = vld [vmem:[%s7 + $0x38] sm:$0xff]
  %v677 = vld [vmem:[%s7 + $0x40] sm:$0xff]
  %v678 = vld [vmem:[%s7 + $0x48] sm:$0xff]
  %v679 = vld [vmem:[%s7 + $0x50] sm:$0xff]
  %v680 = vld [vmem:[%s7 + $0x58] sm:$0xff]
  %v681 = vld [vmem:[%s7 + $0x60] sm:$0xff]
  %v682 = vld [vmem:[%s7 + $0x68] sm:$0xff]
  %v683 = vld [vmem:[%s7 + $0x70] sm:$0xff]
  %v684 = vld [vmem:[%s7 + $0x78] sm:$0xff]
  %685 = vmatprep.subr.mxu0 0.0
  %686 = vmatpush1.msra.mxu0 %v669
  %687 = vmatprep.subr.mxu0 0.0
  %688 = vmatpush1.msra.mxu0 %v670
  %689 = vmatprep.subr.mxu0 0.0
  %690 = vmatpush1.msra.mxu0 %v671
  %691 = vmatprep.subr.mxu0 0.0
  %692 = vmatpush1.msra.mxu0 %v672
  %693 = vmatprep.subr.mxu0 0.0
  %694 = vmatpush1.msra.mxu0 %v673
  %695 = vmatprep.subr.mxu0 0.0
  %696 = vmatpush1.msra.mxu0 %v674
  %697 = vmatprep.subr.mxu0 0.0
  %698 = vmatpush1.msra.mxu0 %v675
  %699 = vmatprep.subr.mxu0 0.0
  %700 = vmatpush1.msra.mxu0 %v676
  %701 = vmatprep.subr.mxu0 0.0
  %702 = vmatpush1.msra.mxu0 %v677
  %703 = vmatprep.subr.mxu0 0.0
  %704 = vmatpush1.msra.mxu0 %v678
  %705 = vmatprep.subr.mxu0 0.0
  %706 = vmatpush1.msra.mxu0 %v679
  %707 = vmatprep.subr.mxu0 0.0
  %708 = vmatpush1.msra.mxu0 %v680
  %709 = vmatprep.subr.mxu0 0.0
  %710 = vmatpush1.msra.mxu0 %v681
  %711 = vmatprep.subr.mxu0 0.0
  %712 = vmatpush1.msra.mxu0 %v682
  %713 = vmatprep.subr.mxu0 0.0
  %714 = vmatpush1.msra.mxu0 %v683
  %715 = vmatprep.subr.mxu0 0.0
  %716 = vmatpush1.msra.mxu0 %v684
  %717 = vmatprep.subr.mxu0 0.0
  %718 = vmatpush1.msra.mxu0 0.0
  %719 = vmatprep.subr.mxu0 0.0
  %720 = vmatpush1.msra.mxu0 0.0
  %721 = vmatprep.subr.mxu0 0.0
  %722 = vmatpush1.msra.mxu0 0.0
  %723 = vmatprep.subr.mxu0 0.0
  %724 = vmatpush1.msra.mxu0 0.0
  %725 = vmatprep.subr.mxu0 0.0
  %726 = vmatpush1.msra.mxu0 0.0
  %727 = vmatprep.subr.mxu0 0.0
  %728 = vmatpush1.msra.mxu0 0.0
  %729 = vmatprep.subr.mxu0 0.0
  %730 = vmatpush1.msra.mxu0 0.0
  %731 = vmatprep.subr.mxu0 0.0
  %732 = vmatpush1.msra.mxu0 0.0
  %733 = vmatprep.subr.mxu0 0.0
  %734 = vmatpush1.msra.mxu0 0.0
  %735 = vmatprep.subr.mxu0 0.0
  %736 = vmatpush1.msra.mxu0 0.0
  %737 = vmatprep.subr.mxu0 0.0
  %738 = vmatpush1.msra.mxu0 0.0
  %739 = vmatprep.subr.mxu0 0.0
  %740 = vmatpush1.msra.mxu0 0.0
  %741 = vmatprep.subr.mxu0 0.0
  %742 = vmatpush1.msra.mxu0 0.0
  %743 = vmatprep.subr.mxu0 0.0
  %744 = vmatpush1.msra.mxu0 0.0
  %745 = vmatprep.subr.mxu0 0.0
  %746 = vmatpush1.msra.mxu0 0.0
  %747 = vmatprep.subr.mxu0 0.0
  %748 = vmatpush1.msra.mxu0 0.0
  %749 = vmatprep.mubr.f32.mxu0 0.0
  %750 = vmatmul.mubr.f32.gmra.mrb[0].mxu0 %v653
  %v751 = vpop.f32.mrb[0].mxu0
  %v752 = vadd.f32 0.0, %v751
  %v753 = vpop.f32.mrb[0].mxu0
  %754 = vmatprep.mubr.f32.mxu0 0.0
  %755 = vmatmul.mubr.f32.gmra.mrb[0].mxu0 %v654
  %v756 = vpop.f32.mrb[0].mxu0
  %v757 = vadd.f32 0.0, %v756
  %v758 = vpop.f32.mrb[0].mxu0
  %759 = vmatprep.mubr.f32.mxu0 0.0
  %760 = vmatmul.mubr.f32.gmra.mrb[0].mxu0 %v655
  %v761 = vpop.f32.mrb[0].mxu0
  %v762 = vadd.f32 0.0, %v761
  %v763 = vpop.f32.mrb[0].mxu0
  %764 = vmatprep.mubr.f32.mxu0 0.0
  %765 = vmatmul.mubr.f32.gmra.mrb[0].mxu0 %v656
  %v766 = vpop.f32.mrb[0].mxu0
  %v767 = vadd.f32 0.0, %v766
  %v768 = vpop.f32.mrb[0].mxu0
  %769 = vmatprep.mubr.f32.mxu0 0.0
  %770 = vmatmul.mubr.f32.gmra.mrb[0].mxu0 %v657
  %v771 = vpop.f32.mrb[0].mxu0
  %v772 = vadd.f32 0.0, %v771
  %v773 = vpop.f32.mrb[0].mxu0
  %774 = vmatprep.mubr.f32.mxu0 0.0
  %775 = vmatmul.mubr.f32.gmra.mrb[0].mxu0 %v658
  %v776 = vpop.f32.mrb[0].mxu0
  %v777 = vadd.f32 0.0, %v776
  %v778 = vpop.f32.mrb[0].mxu0
  %779 = vmatprep.mubr.f32.mxu0 0.0
  %780 = vmatmul.mubr.f32.gmra.mrb[0].mxu0 %v659
  %v781 = vpop.f32.mrb[0].mxu0
  %v782 = vadd.f32 0.0, %v781
  %v783 = vpop.f32.mrb[0].mxu0
  %784 = vmatprep.mubr.f32.mxu0 0.0
  %785 = vmatmul.mubr.f32.gmra.mrb[0].mxu0 %v660
  %v786 = vpop.f32.mrb[0].mxu0
  %v787 = vadd.f32 0.0, %v786
  %v788 = vpop.f32.mrb[0].mxu0
  %789 = vmatprep.mubr.f32.mxu0 0.0
  %790 = vmatmul.mubr.f32.gmra.mrb[0].mxu0 %v661
  %v791 = vpop.f32.mrb[0].mxu0
  %v792 = vadd.f32 0.0, %v791
  %v793 = vpop.f32.mrb[0].mxu0
  %794 = vmatprep.mubr.f32.mxu0 0.0
  %795 = vmatmul.mubr.f32.gmra.mrb[0].mxu0 %v662
  %v796 = vpop.f32.mrb[0].mxu0
  %v797 = vadd.f32 0.0, %v796
  %v798 = vpop.f32.mrb[0].mxu0
  %799 = vmatprep.mubr.f32.mxu0 0.0
  %800 = vmatmul.mubr.f32.gmra.mrb[0].mxu0 %v663
  %v801 = vpop.f32.mrb[0].mxu0
  %v802 = vadd.f32 0.0, %v801
  %v803 = vpop.f32.mrb[0].mxu0
  %804 = vmatprep.mubr.f32.mxu0 0.0
  %805 = vmatmul.mubr.f32.gmra.mrb[0].mxu0 %v664
  %v806 = vpop.f32.mrb[0].mxu0
  %v807 = vadd.f32 0.0, %v806
  %v808 = vpop.f32.mrb[0].mxu0
  %809 = vmatprep.mubr.f32.mxu0 0.0
  %810 = vmatmul.mubr.f32.gmra.mrb[0].mxu0 %v665
  %v811 = vpop.f32.mrb[0].mxu0
  %v812 = vadd.f32 0.0, %v811
  %v813 = vpop.f32.mrb[0].mxu0
  %814 = vmatprep.mubr.f32.mxu0 0.0
  %815 = vmatmul.mubr.f32.gmra.mrb[0].mxu0 %v666
  %v816 = vpop.f32.mrb[0].mxu0
  %v817 = vadd.f32 0.0, %v816
  %v818 = vpop.f32.mrb[0].mxu0
  %819 = vmatprep.mubr.f32.mxu0 0.0
  %820 = vmatmul.mubr.f32.gmra.mrb[0].mxu0 %v667
  %v821 = vpop.f32.mrb[0].mxu0
  %v822 = vadd.f32 0.0, %v821
  %v823 = vpop.f32.mrb[0].mxu0
  %824 = vmatprep.mubr.f32.mxu0 0.0
  %825 = vmatmul.mubr.f32.gmra.mrb[0].mxu0 %v668
  %v826 = vpop.f32.mrb[0].mxu0
  %v827 = vadd.f32 0.0, %v826
  %v828 = vpop.f32.mrb[0].mxu0
  %829 = vdwg.mxu0
  %v830 = vadd.f32 %v575, %v752
  %v831 = vadd.f32 %v580, %v757
  %v832 = vadd.f32 %v585, %v762
  %v833 = vadd.f32 %v590, %v767
  %v834 = vadd.f32 %v595, %v772
  %v835 = vadd.f32 %v600, %v777
  %v836 = vadd.f32 %v605, %v782
  %v837 = vadd.f32 %v610, %v787
  %v838 = vadd.f32 %v615, %v792
  %v839 = vadd.f32 %v620, %v797
  %v840 = vadd.f32 %v625, %v802
  %v841 = vadd.f32 %v630, %v807
  %v842 = vadd.f32 %v635, %v812
  %v843 = vadd.f32 %v640, %v817
  %v844 = vadd.f32 %v645, %v822
  %v845 = vadd.f32 %v650, %v827
  %v846 = vld [vmem:[%s8] sm:$0x1]
  %v848 = vlaneseq
  %v849 = vshrl.u32 %v848, 7
  %v850 = vsub.s32 0, %v849
  %v851 = vrot.slane %v846, %v850
  %v853 = vadd.f32 %v830, %v851
  %v854 = vadd.f32 %v831, %v851
  %v855 = vadd.f32 %v832, %v851
  %v856 = vadd.f32 %v833, %v851
  %v857 = vadd.f32 %v834, %v851
  %v858 = vadd.f32 %v835, %v851
  %v859 = vadd.f32 %v836, %v851
  %v860 = vadd.f32 %v837, %v851
  %v861 = vadd.f32 %v838, %v851
  %v862 = vadd.f32 %v839, %v851
  %v863 = vadd.f32 %v840, %v851
  %v864 = vadd.f32 %v841, %v851
  %v865 = vadd.f32 %v842, %v851
  %v866 = vadd.f32 %v843, %v851
  %v867 = vadd.f32 %v844, %v851
  %v868 = vadd.f32 %v845, %v851
  %v869 = vmax.f32 %v853, 0.0
  %v870 = vmax.f32 %v854, 0.0
  %v871 = vmax.f32 %v855, 0.0
  %v872 = vmax.f32 %v856, 0.0
  %v873 = vmax.f32 %v857, 0.0
  %v874 = vmax.f32 %v858, 0.0
  %v875 = vmax.f32 %v859, 0.0
  %v876 = vmax.f32 %v860, 0.0
  %v877 = vmax.f32 %v861, 0.0
  %v878 = vmax.f32 %v862, 0.0
  %v879 = vmax.f32 %v863, 0.0
  %v880 = vmax.f32 %v864, 0.0
  %v881 = vmax.f32 %v865, 0.0
  %v882 = vmax.f32 %v866, 0.0
  %v883 = vmax.f32 %v867, 0.0
  %v884 = vmax.f32 %v868, 0.0
  %v885 = vld [vmem:[%s9] sm:$0xff]
  %v886 = vld [vmem:[%s9 + $0x8] sm:$0xff]
  %v887 = vld [vmem:[%s9 + $0x10] sm:$0xff]
  %v888 = vld [vmem:[%s9 + $0x18] sm:$0xff]
  %v889 = vld [vmem:[%s10] sm:$0x1]
  %v891 = vlaneseq
  %v892 = vshrl.u32 %v891, 7
  %v893 = vsub.s32 0, %v892
  %v894 = vrot.slane %v889, %v893
  %v897 = vsel %vm459, %v869, 0
  %v900 = vsel %vm459, %v870, 0
  %v903 = vsel %vm459, %v871, 0
  %v906 = vsel %vm459, %v872, 0
  %v909 = vsel %vm459, %v873, 0
  %v912 = vsel %vm459, %v874, 0
  %v915 = vsel %vm459, %v875, 0
  %v918 = vsel %vm459, %v876, 0
  %v921 = vsel %vm459, %v877, 0
  %v924 = vsel %vm459, %v878, 0
  %v927 = vsel %vm459, %v879, 0
  %v930 = vsel %vm459, %v880, 0
  %v933 = vsel %vm459, %v881, 0
  %v936 = vsel %vm459, %v882, 0
  %v939 = vsel %vm459, %v883, 0
  %v942 = vsel %vm459, %v884, 0
  %944 = vmatprep.subr.mxu0 0.0
  %945 = vmatpush1.msra.mxu0 %v885
  %946 = vmatprep.subr.mxu0 0.0
  %947 = vmatpush1.msra.mxu0 %v886
  %948 = vmatprep.subr.mxu0 0.0
  %949 = vmatpush1.msra.mxu0 %v887
  %950 = vmatprep.subr.mxu0 0.0
  %951 = vmatpush1.msra.mxu0 %v888
  %952 = vmatprep.subr.mxu0 0.0
  %953 = vmatpush1.msra.mxu0 0.0
  %954 = vmatprep.subr.mxu0 0.0
  %955 = vmatpush1.msra.mxu0 0.0
  %956 = vmatprep.subr.mxu0 0.0
  %957 = vmatpush1.msra.mxu0 0.0
  %958 = vmatprep.subr.mxu0 0.0
  %959 = vmatpush1.msra.mxu0 0.0
  %960 = vmatprep.subr.mxu0 0.0
  %961 = vmatpush1.msra.mxu0 0.0
  %962 = vmatprep.subr.mxu0 0.0
  %963 = vmatpush1.msra.mxu0 0.0
  %964 = vmatprep.subr.mxu0 0.0
  %965 = vmatpush1.msra.mxu0 0.0
  %966 = vmatprep.subr.mxu0 0.0
  %967 = vmatpush1.msra.mxu0 0.0
  %968 = vmatprep.subr.mxu0 0.0
  %969 = vmatpush1.msra.mxu0 0.0
  %970 = vmatprep.subr.mxu0 0.0
  %971 = vmatpush1.msra.mxu0 0.0
  %972 = vmatprep.subr.mxu0 0.0
  %973 = vmatpush1.msra.mxu0 0.0
  %974 = vmatprep.subr.mxu0 0.0
  %975 = vmatpush1.msra.mxu0 0.0
  %976 = vmatprep.subr.mxu0 0.0
  %977 = vmatpush1.msra.mxu0 0.0
  %978 = vmatprep.subr.mxu0 0.0
  %979 = vmatpush1.msra.mxu0 0.0
  %980 = vmatprep.subr.mxu0 0.0
  %981 = vmatpush1.msra.mxu0 0.0
  %982 = vmatprep.subr.mxu0 0.0
  %983 = vmatpush1.msra.mxu0 0.0
  %984 = vmatprep.subr.mxu0 0.0
  %985 = vmatpush1.msra.mxu0 0.0
  %986 = vmatprep.subr.mxu0 0.0
  %987 = vmatpush1.msra.mxu0 0.0
  %988 = vmatprep.subr.mxu0 0.0
  %989 = vmatpush1.msra.mxu0 0.0
  %990 = vmatprep.subr.mxu0 0.0
  %991 = vmatpush1.msra.mxu0 0.0
  %992 = vmatprep.subr.mxu0 0.0
  %993 = vmatpush1.msra.mxu0 0.0
  %994 = vmatprep.subr.mxu0 0.0
  %995 = vmatpush1.msra.mxu0 0.0
  %996 = vmatprep.subr.mxu0 0.0
  %997 = vmatpush1.msra.mxu0 0.0
  %998 = vmatprep.subr.mxu0 0.0
  %999 = vmatpush1.msra.mxu0 0.0
  %1000 = vmatprep.subr.mxu0 0.0
  %1001 = vmatpush1.msra.mxu0 0.0
  %1002 = vmatprep.subr.mxu0 0.0
  %1003 = vmatpush1.msra.mxu0 0.0
  %1004 = vmatprep.subr.mxu0 0.0
  %1005 = vmatpush1.msra.mxu0 0.0
  %1006 = vmatprep.subr.mxu0 0.0
  %1007 = vmatpush1.msra.mxu0 0.0
  %1008 = vmatprep.mubr.f32.mxu0 0.0
  %1009 = vmatmul.mubr.f32.gmra.mrb[0].mxu0 %v897
  %v1010 = vpop.f32.mrb[0].mxu0
  %v1011 = vadd.f32 %v894, %v1010
  %v1012 = vpop.f32.mrb[0].mxu0
  %1013 = vmatprep.mubr.f32.mxu0 0.0
  %1014 = vmatmul.mubr.f32.gmra.mrb[0].mxu0 %v900
  %v1015 = vpop.f32.mrb[0].mxu0
  %v1016 = vadd.f32 %v894, %v1015
  %v1017 = vpop.f32.mrb[0].mxu0
  %1018 = vmatprep.mubr.f32.mxu0 0.0
  %1019 = vmatmul.mubr.f32.gmra.mrb[0].mxu0 %v903
  %v1020 = vpop.f32.mrb[0].mxu0
  %v1021 = vadd.f32 %v894, %v1020
  %v1022 = vpop.f32.mrb[0].mxu0
  %1023 = vmatprep.mubr.f32.mxu0 0.0
  %1024 = vmatmul.mubr.f32.gmra.mrb[0].mxu0 %v906
  %v1025 = vpop.f32.mrb[0].mxu0
  %v1026 = vadd.f32 %v894, %v1025
  %v1027 = vpop.f32.mrb[0].mxu0
  %1028 = vmatprep.mubr.f32.mxu0 0.0
  %1029 = vmatmul.mubr.f32.gmra.mrb[0].mxu0 %v909
  %v1030 = vpop.f32.mrb[0].mxu0
  %v1031 = vadd.f32 %v894, %v1030
  %v1032 = vpop.f32.mrb[0].mxu0
  %1033 = vmatprep.mubr.f32.mxu0 0.0
  %1034 = vmatmul.mubr.f32.gmra.mrb[0].mxu0 %v912
  %v1035 = vpop.f32.mrb[0].mxu0
  %v1036 = vadd.f32 %v894, %v1035
  %v1037 = vpop.f32.mrb[0].mxu0
  %1038 = vmatprep.mubr.f32.mxu0 0.0
  %1039 = vmatmul.mubr.f32.gmra.mrb[0].mxu0 %v915
  %v1040 = vpop.f32.mrb[0].mxu0
  %v1041 = vadd.f32 %v894, %v1040
  %v1042 = vpop.f32.mrb[0].mxu0
  %1043 = vmatprep.mubr.f32.mxu0 0.0
  %1044 = vmatmul.mubr.f32.gmra.mrb[0].mxu0 %v918
  %v1045 = vpop.f32.mrb[0].mxu0
  %v1046 = vadd.f32 %v894, %v1045
  %v1047 = vpop.f32.mrb[0].mxu0
  %1048 = vmatprep.mubr.f32.mxu0 0.0
  %1049 = vmatmul.mubr.f32.gmra.mrb[0].mxu0 %v921
  %v1050 = vpop.f32.mrb[0].mxu0
  %v1051 = vadd.f32 %v894, %v1050
  %v1052 = vpop.f32.mrb[0].mxu0
  %1053 = vmatprep.mubr.f32.mxu0 0.0
  %1054 = vmatmul.mubr.f32.gmra.mrb[0].mxu0 %v924
  %v1055 = vpop.f32.mrb[0].mxu0
  %v1056 = vadd.f32 %v894, %v1055
  %v1057 = vpop.f32.mrb[0].mxu0
  %1058 = vmatprep.mubr.f32.mxu0 0.0
  %1059 = vmatmul.mubr.f32.gmra.mrb[0].mxu0 %v927
  %v1060 = vpop.f32.mrb[0].mxu0
  %v1061 = vadd.f32 %v894, %v1060
  %v1062 = vpop.f32.mrb[0].mxu0
  %1063 = vmatprep.mubr.f32.mxu0 0.0
  %1064 = vmatmul.mubr.f32.gmra.mrb[0].mxu0 %v930
  %v1065 = vpop.f32.mrb[0].mxu0
  %v1066 = vadd.f32 %v894, %v1065
  %v1067 = vpop.f32.mrb[0].mxu0
  %1068 = vmatprep.mubr.f32.mxu0 0.0
  %1069 = vmatmul.mubr.f32.gmra.mrb[0].mxu0 %v933
  %v1070 = vpop.f32.mrb[0].mxu0
  %v1071 = vadd.f32 %v894, %v1070
  %v1072 = vpop.f32.mrb[0].mxu0
  %1073 = vmatprep.mubr.f32.mxu0 0.0
  %1074 = vmatmul.mubr.f32.gmra.mrb[0].mxu0 %v936
  %v1075 = vpop.f32.mrb[0].mxu0
  %v1076 = vadd.f32 %v894, %v1075
  %v1077 = vpop.f32.mrb[0].mxu0
  %1078 = vmatprep.mubr.f32.mxu0 0.0
  %1079 = vmatmul.mubr.f32.gmra.mrb[0].mxu0 %v939
  %v1080 = vpop.f32.mrb[0].mxu0
  %v1081 = vadd.f32 %v894, %v1080
  %v1082 = vpop.f32.mrb[0].mxu0
  %1083 = vmatprep.mubr.f32.mxu0 0.0
  %1084 = vmatmul.mubr.f32.gmra.mrb[0].mxu0 %v942
  %v1085 = vpop.f32.mrb[0].mxu0
  %v1086 = vadd.f32 %v894, %v1085
  %v1087 = vpop.f32.mrb[0].mxu0
  %1088 = vdwg.mxu0
  %v1089 = vmax.f32 %v1011, 0.0
  %v1090 = vmax.f32 %v1016, 0.0
  %v1091 = vmax.f32 %v1021, 0.0
  %v1092 = vmax.f32 %v1026, 0.0
  %v1093 = vmax.f32 %v1031, 0.0
  %v1094 = vmax.f32 %v1036, 0.0
  %v1095 = vmax.f32 %v1041, 0.0
  %v1096 = vmax.f32 %v1046, 0.0
  %v1097 = vmax.f32 %v1051, 0.0
  %v1098 = vmax.f32 %v1056, 0.0
  %v1099 = vmax.f32 %v1061, 0.0
  %v1100 = vmax.f32 %v1066, 0.0
  %v1101 = vmax.f32 %v1071, 0.0
  %v1102 = vmax.f32 %v1076, 0.0
  %v1103 = vmax.f32 %v1081, 0.0
  %v1104 = vmax.f32 %v1086, 0.0
  %v1105 = vld [vmem:[%s11] sm:$0xff]
  %v1106 = vld [vmem:[%s11 + $0x8] sm:$0xff]
  %v1107 = vld [vmem:[%s11 + $0x10] sm:$0xff]
  %v1108 = vld [vmem:[%s11 + $0x18] sm:$0xff]
  %v1109 = vld [vmem:[%s12] sm:$0x1]
  %v1111 = vlaneseq
  %v1112 = vshrl.u32 %v1111, 7
  %v1113 = vsub.s32 0, %v1112
  %v1114 = vrot.slane %v1109, %v1113
  %v1117 = vsel %vm459, %v1089, 0
  %v1120 = vsel %vm459, %v1090, 0
  %v1123 = vsel %vm459, %v1091, 0
  %v1126 = vsel %vm459, %v1092, 0
  %v1129 = vsel %vm459, %v1093, 0
  %v1132 = vsel %vm459, %v1094, 0
  %v1135 = vsel %vm459, %v1095, 0
  %v1138 = vsel %vm459, %v1096, 0
  %v1141 = vsel %vm459, %v1097, 0
  %v1144 = vsel %vm459, %v1098, 0
  %v1147 = vsel %vm459, %v1099, 0
  %v1150 = vsel %vm459, %v1100, 0
  %v1153 = vsel %vm459, %v1101, 0
  %v1156 = vsel %vm459, %v1102, 0
  %v1159 = vsel %vm459, %v1103, 0
  %v1162 = vsel %vm459, %v1104, 0
  %1164 = vmatprep.subr.mxu0 0.0
  %1165 = vmatpush1.msra.mxu0 %v1105
  %1166 = vmatprep.subr.mxu0 0.0
  %1167 = vmatpush1.msra.mxu0 %v1106
  %1168 = vmatprep.subr.mxu0 0.0
  %1169 = vmatpush1.msra.mxu0 %v1107
  %1170 = vmatprep.subr.mxu0 0.0
  %1171 = vmatpush1.msra.mxu0 %v1108
  %1172 = vmatprep.subr.mxu0 0.0
  %1173 = vmatpush1.msra.mxu0 0.0
  %1174 = vmatprep.subr.mxu0 0.0
  %1175 = vmatpush1.msra.mxu0 0.0
  %1176 = vmatprep.subr.mxu0 0.0
  %1177 = vmatpush1.msra.mxu0 0.0
  %1178 = vmatprep.subr.mxu0 0.0
  %1179 = vmatpush1.msra.mxu0 0.0
  %1180 = vmatprep.subr.mxu0 0.0
  %1181 = vmatpush1.msra.mxu0 0.0
  %1182 = vmatprep.subr.mxu0 0.0
  %1183 = vmatpush1.msra.mxu0 0.0
  %1184 = vmatprep.subr.mxu0 0.0
  %1185 = vmatpush1.msra.mxu0 0.0
  %1186 = vmatprep.subr.mxu0 0.0
  %1187 = vmatpush1.msra.mxu0 0.0
  %1188 = vmatprep.subr.mxu0 0.0
  %1189 = vmatpush1.msra.mxu0 0.0
  %1190 = vmatprep.subr.mxu0 0.0
  %1191 = vmatpush1.msra.mxu0 0.0
  %1192 = vmatprep.subr.mxu0 0.0
  %1193 = vmatpush1.msra.mxu0 0.0
  %1194 = vmatprep.subr.mxu0 0.0
  %1195 = vmatpush1.msra.mxu0 0.0
  %1196 = vmatprep.subr.mxu0 0.0
  %1197 = vmatpush1.msra.mxu0 0.0
  %1198 = vmatprep.subr.mxu0 0.0
  %1199 = vmatpush1.msra.mxu0 0.0
  %1200 = vmatprep.subr.mxu0 0.0
  %1201 = vmatpush1.msra.mxu0 0.0
  %1202 = vmatprep.subr.mxu0 0.0
  %1203 = vmatpush1.msra.mxu0 0.0
  %1204 = vmatprep.subr.mxu0 0.0
  %1205 = vmatpush1.msra.mxu0 0.0
  %1206 = vmatprep.subr.mxu0 0.0
  %1207 = vmatpush1.msra.mxu0 0.0
  %1208 = vmatprep.subr.mxu0 0.0
  %1209 = vmatpush1.msra.mxu0 0.0
  %1210 = vmatprep.subr.mxu0 0.0
  %1211 = vmatpush1.msra.mxu0 0.0
  %1212 = vmatprep.subr.mxu0 0.0
  %1213 = vmatpush1.msra.mxu0 0.0
  %1214 = vmatprep.subr.mxu0 0.0
  %1215 = vmatpush1.msra.mxu0 0.0
  %1216 = vmatprep.subr.mxu0 0.0
  %1217 = vmatpush1.msra.mxu0 0.0
  %1218 = vmatprep.subr.mxu0 0.0
  %1219 = vmatpush1.msra.mxu0 0.0
  %1220 = vmatprep.subr.mxu0 0.0
  %1221 = vmatpush1.msra.mxu0 0.0
  %1222 = vmatprep.subr.mxu0 0.0
  %1223 = vmatpush1.msra.mxu0 0.0
  %1224 = vmatprep.subr.mxu0 0.0
  %1225 = vmatpush1.msra.mxu0 0.0
  %1226 = vmatprep.subr.mxu0 0.0
  %1227 = vmatpush1.msra.mxu0 0.0
  %1228 = vmatprep.mubr.f32.mxu0 0.0
  %1229 = vmatmul.mubr.f32.gmra.mrb[0].mxu0 %v1117
  %v1230 = vpop.f32.mrb[0].mxu0
  %v1231 = vadd.f32 %v1114, %v1230
  %v1232 = vpop.f32.mrb[0].mxu0
  %1233 = vmatprep.mubr.f32.mxu0 0.0
  %1234 = vmatmul.mubr.f32.gmra.mrb[0].mxu0 %v1120
  %v1235 = vpop.f32.mrb[0].mxu0
  %v1236 = vadd.f32 %v1114, %v1235
  %v1237 = vpop.f32.mrb[0].mxu0
  %1238 = vmatprep.mubr.f32.mxu0 0.0
  %1239 = vmatmul.mubr.f32.gmra.mrb[0].mxu0 %v1123
  %v1240 = vpop.f32.mrb[0].mxu0
  %v1241 = vadd.f32 %v1114, %v1240
  %v1242 = vpop.f32.mrb[0].mxu0
  %1243 = vmatprep.mubr.f32.mxu0 0.0
  %1244 = vmatmul.mubr.f32.gmra.mrb[0].mxu0 %v1126
  %v1245 = vpop.f32.mrb[0].mxu0
  %v1246 = vadd.f32 %v1114, %v1245
  %v1247 = vpop.f32.mrb[0].mxu0
  %1248 = vmatprep.mubr.f32.mxu0 0.0
  %1249 = vmatmul.mubr.f32.gmra.mrb[0].mxu0 %v1129
  %v1250 = vpop.f32.mrb[0].mxu0
  %v1251 = vadd.f32 %v1114, %v1250
  %v1252 = vpop.f32.mrb[0].mxu0
  %1253 = vmatprep.mubr.f32.mxu0 0.0
  %1254 = vmatmul.mubr.f32.gmra.mrb[0].mxu0 %v1132
  %v1255 = vpop.f32.mrb[0].mxu0
  %v1256 = vadd.f32 %v1114, %v1255
  %v1257 = vpop.f32.mrb[0].mxu0
  %1258 = vmatprep.mubr.f32.mxu0 0.0
  %1259 = vmatmul.mubr.f32.gmra.mrb[0].mxu0 %v1135
  %v1260 = vpop.f32.mrb[0].mxu0
  %v1261 = vadd.f32 %v1114, %v1260
  %v1262 = vpop.f32.mrb[0].mxu0
  %1263 = vmatprep.mubr.f32.mxu0 0.0
  %1264 = vmatmul.mubr.f32.gmra.mrb[0].mxu0 %v1138
  %v1265 = vpop.f32.mrb[0].mxu0
  %v1266 = vadd.f32 %v1114, %v1265
  %v1267 = vpop.f32.mrb[0].mxu0
  %1268 = vmatprep.mubr.f32.mxu0 0.0
  %1269 = vmatmul.mubr.f32.gmra.mrb[0].mxu0 %v1141
  %v1270 = vpop.f32.mrb[0].mxu0
  %v1271 = vadd.f32 %v1114, %v1270
  %v1272 = vpop.f32.mrb[0].mxu0
  %1273 = vmatprep.mubr.f32.mxu0 0.0
  %1274 = vmatmul.mubr.f32.gmra.mrb[0].mxu0 %v1144
  %v1275 = vpop.f32.mrb[0].mxu0
  %v1276 = vadd.f32 %v1114, %v1275
  %v1277 = vpop.f32.mrb[0].mxu0
  %1278 = vmatprep.mubr.f32.mxu0 0.0
  %1279 = vmatmul.mubr.f32.gmra.mrb[0].mxu0 %v1147
  %v1280 = vpop.f32.mrb[0].mxu0
  %v1281 = vadd.f32 %v1114, %v1280
  %v1282 = vpop.f32.mrb[0].mxu0
  %1283 = vmatprep.mubr.f32.mxu0 0.0
  %1284 = vmatmul.mubr.f32.gmra.mrb[0].mxu0 %v1150
  %v1285 = vpop.f32.mrb[0].mxu0
  %v1286 = vadd.f32 %v1114, %v1285
  %v1287 = vpop.f32.mrb[0].mxu0
  %1288 = vmatprep.mubr.f32.mxu0 0.0
  %1289 = vmatmul.mubr.f32.gmra.mrb[0].mxu0 %v1153
  %v1290 = vpop.f32.mrb[0].mxu0
  %v1291 = vadd.f32 %v1114, %v1290
  %v1292 = vpop.f32.mrb[0].mxu0
  %1293 = vmatprep.mubr.f32.mxu0 0.0
  %1294 = vmatmul.mubr.f32.gmra.mrb[0].mxu0 %v1156
  %v1295 = vpop.f32.mrb[0].mxu0
  %v1296 = vadd.f32 %v1114, %v1295
  %v1297 = vpop.f32.mrb[0].mxu0
  %1298 = vmatprep.mubr.f32.mxu0 0.0
  %1299 = vmatmul.mubr.f32.gmra.mrb[0].mxu0 %v1159
  %v1300 = vpop.f32.mrb[0].mxu0
  %v1301 = vadd.f32 %v1114, %v1300
  %v1302 = vpop.f32.mrb[0].mxu0
  %1303 = vmatprep.mubr.f32.mxu0 0.0
  %1304 = vmatmul.mubr.f32.gmra.mrb[0].mxu0 %v1162
  %v1305 = vpop.f32.mrb[0].mxu0
  %v1306 = vadd.f32 %v1114, %v1305
  %v1307 = vpop.f32.mrb[0].mxu0
  %1308 = vdwg.mxu0
  %v1309 = vmul.f32 %v44, %v1231
  %v1310 = vmul.f32 %v45, %v1236
  %v1311 = vmul.f32 %v46, %v1241
  %v1312 = vmul.f32 %v47, %v1246
  %v1313 = vmul.f32 %v48, %v1251
  %v1314 = vmul.f32 %v49, %v1256
  %v1315 = vmul.f32 %v50, %v1261
  %v1316 = vmul.f32 %v51, %v1266
  %v1317 = vmul.f32 %v52, %v1271
  %v1318 = vmul.f32 %v53, %v1276
  %v1319 = vmul.f32 %v54, %v1281
  %v1320 = vmul.f32 %v55, %v1286
  %v1321 = vmul.f32 %v56, %v1291
  %v1322 = vmul.f32 %v57, %v1296
  %v1323 = vmul.f32 %v58, %v1301
  %v1324 = vmul.f32 %v59, %v1306
  %v1325 = vpack.c.bf16 %v1310, %v1309
  %v1326 = vpack.c.bf16 %v1312, %v1311
  %v1327 = vpack.c.bf16 %v1314, %v1313
  %v1328 = vpack.c.bf16 %v1316, %v1315
  %v1329 = vpack.c.bf16 %v1318, %v1317
  %v1330 = vpack.c.bf16 %v1320, %v1319
  %v1331 = vpack.c.bf16 %v1322, %v1321
  %v1332 = vpack.c.bf16 %v1324, %v1323
  %v1341 = vunpack.c.l.b16 %v1325
  %v1342 = vunpack.c.h.b16 %v1325
  %v1343 = vunpack.c.l.b16 %v1326
  %v1344 = vunpack.c.h.b16 %v1326
  %v1345 = vunpack.c.l.b16 %v1327
  %v1346 = vunpack.c.h.b16 %v1327
  %v1347 = vunpack.c.l.b16 %v1328
  %v1348 = vunpack.c.h.b16 %v1328
  %v1349 = vunpack.c.l.b16 %v1329
  %v1350 = vunpack.c.h.b16 %v1329
  %v1351 = vunpack.c.l.b16 %v1330
  %v1352 = vunpack.c.h.b16 %v1330
  %v1353 = vunpack.c.l.b16 %v1331
  %v1354 = vunpack.c.h.b16 %v1331
  %v1355 = vunpack.c.l.b16 %v1332
  %v1356 = vunpack.c.h.b16 %v1332
  %v1357 = vpack.c.b16 %v1341, %v1341
  %v1358 = vpack.c.b16 %v1342, %v1342
  %v1359 = vpack.c.b16 %v1343, %v1343
  %v1360 = vpack.c.b16 %v1344, %v1344
  %v1361 = vpack.c.b16 %v1345, %v1345
  %v1362 = vpack.c.b16 %v1346, %v1346
  %v1363 = vpack.c.b16 %v1347, %v1347
  %v1364 = vpack.c.b16 %v1348, %v1348
  %v1365 = vpack.c.b16 %v1349, %v1349
  %v1366 = vpack.c.b16 %v1350, %v1350
  %v1367 = vpack.c.b16 %v1351, %v1351
  %v1368 = vpack.c.b16 %v1352, %v1352
  %v1369 = vpack.c.b16 %v1353, %v1353
  %v1370 = vpack.c.b16 %v1354, %v1354
  %v1371 = vpack.c.b16 %v1355, %v1355
  %v1372 = vpack.c.b16 %v1356, %v1356
  %1389 = vst [vmem:[%s13] sm:$0xf] %v1357
  %1390 = vst [vmem:[%s13 + $0x4] sm:$0xf] %v1358
  %1391 = vst [vmem:[%s13 + $0x8] sm:$0xf] %v1359
  %1392 = vst [vmem:[%s13 + $0xc] sm:$0xf] %v1360
  %1393 = vst [vmem:[%s13 + $0x10] sm:$0xf] %v1361
  %1394 = vst [vmem:[%s13 + $0x14] sm:$0xf] %v1362
  %1395 = vst [vmem:[%s13 + $0x18] sm:$0xf] %v1363
  %1396 = vst [vmem:[%s13 + $0x1c] sm:$0xf] %v1364
  %1397 = vst [vmem:[%s13 + $0x20] sm:$0xf] %v1365
  %1398 = vst [vmem:[%s13 + $0x24] sm:$0xf] %v1366
  %1399 = vst [vmem:[%s13 + $0x28] sm:$0xf] %v1367
  %1400 = vst [vmem:[%s13 + $0x2c] sm:$0xf] %v1368
  %1401 = vst [vmem:[%s13 + $0x30] sm:$0xf] %v1369
  %1402 = vst [vmem:[%s13 + $0x34] sm:$0xf] %v1370
  %1403 = vst [vmem:[%s13 + $0x38] sm:$0xf] %v1371
  %1404 = vst [vmem:[%s13 + $0x3c] sm:$0xf] %v1372
  // Predicated region
  $region54: #{smooth_conv_layer.2} parent=0 // pred_check
    _
  $region55: #{smooth_conv_layer.2} parent=0 // pred_check_branch
    %1406 = sbr.rel (0) target = $region57
  $region56: #{smooth_conv_layer.2} parent=0 // pred_region
    _
  $region57: #{smooth_conv_layer.2} parent=0 // pred_fallthru
    _
  // Predicated region
  $region58: #{smooth_conv_layer.2} parent=0 // pred_check
    _
  $region59: #{smooth_conv_layer.2} parent=0 // pred_check_branch
    %1408 = sbr.rel (0) target = $region61
  $region60: #{smooth_conv_layer.2} parent=0 // pred_region
    _
  $region61: #{smooth_conv_layer.2} parent=0 // pred_fallthru
    _

</llo_original>
